<compile_context>
chip_gen: v7x
topology: tpu7x:2x2x1
jax: 0.10.0
libtpu: 0.0.40
codegen_flags: <defaults>
</compile_context>

<pallas_src>
import functools

import jax
import jax.numpy as jnp
import numpy as np
from jax import lax
from jax.experimental import pallas as pl
from jax.experimental.pallas import tpu as pltpu


# ---------------------------------------------------------------------------
# Pallas kernels
# ---------------------------------------------------------------------------

def _linear_ln_relu_kernel(x_ref, w_ref, b_ref, g_ref, beta_ref, o_ref, acc_ref):
    """One (tm, N) output tile of  ReLU(LayerNorm(x @ w + b)).  Grid = (M//tm, K//tk)."""
    k = pl.program_id(1)

    @pl.when(k == 0)
    def _():
        # Initialise the f32 accumulator with the broadcast bias (saves an epilogue add).
        acc_ref[...] = jnp.broadcast_to(b_ref[...].astype(jnp.float32), acc_ref.shape)

    acc_ref[...] += jnp.dot(x_ref[...], w_ref[...],
                            preferred_element_type=jnp.float32)

    @pl.when(k == pl.num_programs(1) - 1)
    def _():
        z = acc_ref[...]                                            # (tm, N), already has bias
        mean = jnp.mean(z, axis=-1, keepdims=True)
        c = z - mean
        var = jnp.mean(c * c, axis=-1, keepdims=True)
        y = c * lax.rsqrt(var + 1e-5)                               # eps = PyTorch default
        y = y * g_ref[...].astype(jnp.float32) + beta_ref[...].astype(jnp.float32)
        o_ref[...] = jnp.maximum(y, 0.0).astype(o_ref.dtype)


def _linear_residual_kernel(x_ref, w_ref, b_ref, res_ref, o_ref, acc_ref):
    """One (tm, N) output tile of  res + (x @ w + b).  Grid = (M//tm, K//tk)."""
    k = pl.program_id(1)

    @pl.when(k == 0)
    def _():
        acc_ref[...] = jnp.broadcast_to(b_ref[...].astype(jnp.float32), acc_ref.shape)

    acc_ref[...] += jnp.dot(x_ref[...], w_ref[...],
                            preferred_element_type=jnp.float32)

    @pl.when(k == pl.num_programs(1) - 1)
    def _():
        o_ref[...] = (acc_ref[...] + res_ref[...].astype(jnp.float32)).astype(o_ref.dtype)


# ---------------------------------------------------------------------------
# Tiling helpers (VMEM / generation aware)
# ---------------------------------------------------------------------------

def _round_up(x, m):
    return (x + m - 1) // m * m


def _pick_tk(K, pref):
    """K tile: multiple of 128 dividing K (lane constraint), or full K if not tileable."""
    if K <= pref or K % 128:
        return K
    t = (pref // 128) * 128
    while K % t:
        t -= 128
    return t


def _choose_m_tiling(M, tm_pref):
    """Pick (tm, padded_M).  Guarantees >= 2 M-tiles when M > 8 (keeps both v7x cores busy)."""
    if M <= 8:
        return 8, 8
    if M <= 2 * tm_pref:
        tm = _round_up(-(-M // 2), 8)
        return tm, 2 * tm
    return tm_pref, _round_up(M, tm_pref)


def _mm_footprint(tm, tk, N, in_bytes, out_bytes, res_bytes, n_vec):
    """VMEM bytes for one matmul kernel's blocks at a given tiling."""
    return (2 * tm * tk * in_bytes        # activation blocks (double-buffered)
            + 2 * tk * N * in_bytes       # weight blocks (double-buffered)
            + 2 * tm * N * out_bytes      # output blocks (double-buffered)
            + tm * N * 4                  # f32 accumulator scratch
            + tm * N * res_bytes          # residual block (single-buffered)
            + n_vec * N * 4)              # (1, N) epilogue vectors (single-buffered)


def _vmem_capacity_bytes():
    try:
        return int(pltpu.get_tpu_info().vmem_capacity_bytes)
    except Exception:
        return 64 << 20   # conservative fallback (v7x per-TensorCore VMEM)


def _vmem_limit(footprint):
    return int(min(128 << 20, max(2 * footprint + (2 << 20), 32 << 20)))


def _plan_tiles(M, hid):
    """Pick (tm, padded_M, tk_pref) so the heaviest layer (F x F, bf16) fits the VMEM budget."""
    F = 4 * hid
    budget = int(0.7 * min(_vmem_capacity_bytes(), 128 << 20))
    for tm_pref in (512, 256, 128, 64, 32, 16, 8):
        tm, Mp = _choose_m_tiling(M, tm_pref)
        for tk_pref in (512, 256, 128):
            tk = _pick_tk(F, tk_pref)
            if _mm_footprint(tm, tk, F, 2, 2, 0, 3) <= budget:
                return tm, Mp, tk_pref
    tm, Mp = _choose_m_tiling(M, 8)
    return tm, Mp, 128


# ---------------------------------------------------------------------------
# pallas_call wrappers (tiled + pipelined)
# ---------------------------------------------------------------------------

def _linear_ln_relu(x, w_t, b, gamma, beta, *, out_dtype, tm, tk, vmem_limit):
    """x: (M, K) bf16, w_t: (K, N) bf16 -> ReLU(LayerNorm(x @ w_t + b)) : (M, N) out_dtype."""
    M, K = x.shape
    N = w_t.shape[1]
    grid = (M // tm, K // tk)
    return pl.pallas_call(
        _linear_ln_relu_kernel,
        out_shape=jax.ShapeDtypeStruct((M, N), out_dtype),
        grid=grid,
        in_specs=[
            pl.BlockSpec((tm, tk), lambda i, k: (i, k)),
            pl.BlockSpec((tk, N), lambda i, k: (k, 0)),
            pl.BlockSpec((1, N), lambda i, k: (0, 0), pipeline_mode=pl.Buffered(1)),
            pl.BlockSpec((1, N), lambda i, k: (0, 0), pipeline_mode=pl.Buffered(1)),
            pl.BlockSpec((1, N), lambda i, k: (0, 0), pipeline_mode=pl.Buffered(1)),
        ],
        out_specs=pl.BlockSpec((tm, N), lambda i, k: (i, 0)),
        scratch_shapes=[pltpu.VMEM((tm, N), jnp.float32)],
        compiler_params=pltpu.CompilerParams(
            dimension_semantics=("parallel", "arbitrary"),
            vmem_limit_bytes=vmem_limit),
    )(x, w_t, b.reshape(1, N), gamma.reshape(1, N), beta.reshape(1, N))


def _linear_residual(x, w_t, b, res, *, tm, tk, vmem_limit):
    """x: (M, K) bf16, w_t: (K, N) bf16, res: (M, N) f32 -> res + x @ w_t + b : (M, N) f32."""
    M, K = x.shape
    N = w_t.shape[1]
    grid = (M // tm, K // tk)
    return pl.pallas_call(
        _linear_residual_kernel,
        out_shape=jax.ShapeDtypeStruct((M, N), res.dtype),
        grid=grid,
        in_specs=[
            pl.BlockSpec((tm, tk), lambda i, k: (i, k)),
            pl.BlockSpec((tk, N), lambda i, k: (k, 0)),
            pl.BlockSpec((1, N), lambda i, k: (0, 0), pipeline_mode=pl.Buffered(1)),
            pl.BlockSpec((tm, N), lambda i, k: (i, 0), pipeline_mode=pl.Buffered(1)),
        ],
        out_specs=pl.BlockSpec((tm, N), lambda i, k: (i, 0)),
        scratch_shapes=[pltpu.VMEM((tm, N), jnp.float32)],
        compiler_params=pltpu.CompilerParams(
            dimension_semantics=("parallel", "arbitrary"),
            vmem_limit_bytes=vmem_limit),
    )(x, w_t, b.reshape(1, N), res)


# ---------------------------------------------------------------------------
# Full forward pass
# ---------------------------------------------------------------------------

@jax.jit
def feedforward_block(x, params):
    """x: (..., hid_dim) f32 -> (..., hid_dim) f32.  Matches FeedforwardBlock.forward."""
    orig_shape = x.shape
    hid = orig_shape[-1]
    F = 4 * hid
    x2d = x.reshape(-1, hid)
    M = x2d.shape[0]

    # --- tiling plan (static; depends only on shapes & chip VMEM) ---
    tm, Mp, tk_pref = _plan_tiles(M, hid)
    tk1 = _pick_tk(hid, tk_pref)
    tk2 = _pick_tk(F, tk_pref)

    if Mp != M:                                   # padded rows are dropped at the end
        x2d = jnp.pad(x2d, ((0, Mp - M), (0, 0)))

    # --- bf16 operands for the MXU (f32 accumulation inside the kernels) ---
    x_bf = x2d.astype(jnp.bfloat16)
    w1 = params["w1_t"].astype(jnp.bfloat16)
    w2 = params["w2_t"].astype(jnp.bfloat16)
    w3 = params["w3_t"].astype(jnp.bfloat16)

    fp1 = _mm_footprint(tm, tk1, F, 2, 2, 0, 3)
    fp2 = _mm_footprint(tm, tk2, F, 2, 2, 0, 3)
    fp3 = _mm_footprint(tm, tk2, hid, 2, 4, 4, 1)

    h = _linear_ln_relu(x_bf, w1, params["b1"], params["ln1_g"], params["ln1_b"],
                        out_dtype=jnp.bfloat16, tm=tm, tk=tk1,
                        vmem_limit=_vmem_limit(fp1))                 # (Mp, 4*hid) bf16
    h = _linear_ln_relu(h, w2, params["b2"], params["ln2_g"], params["ln2_b"],
                        out_dtype=jnp.bfloat16, tm=tm, tk=tk2,
                        vmem_limit=_vmem_limit(fp2))                 # (Mp, 4*hid) bf16
    out = _linear_residual(h, w3, params["b3"], x2d,
                           tm=tm, tk=tk2,
                           vmem_limit=_vmem_limit(fp3))              # (Mp, hid) f32

    if Mp != M:
        out = out[:M]
    return out.reshape(orig_shape)


# ---------------------------------------------------------------------------
# References (for correctness checking)
# ---------------------------------------------------------------------------

def _ln(z, g, b):
    m = z.mean(-1, keepdims=True)
    c = z - m
    v = (c * c).mean(-1, keepdims=True)
    return c * lax.rsqrt(v + 1e-5) * g + b


def reference_forward(x, params):
    """Strict f32 reference (the PyTorch module's numerics)."""
    dot = functools.partial(jnp.dot, precision=lax.Precision.HIGHEST)
    h = jnp.maximum(_ln(dot(x, params["w1_t"]) + params["b1"],
                        params["ln1_g"], params["ln1_b"]), 0.0)
    h = jnp.maximum(_ln(dot(h, params["w2_t"]) + params["b2"],
                        params["ln2_g"], params["ln2_b"]), 0.0)
    return x + dot(h, params["w3_t"]) + params["b3"]


def reference_mixed(x, params):
    """Mirrors the kernel's numerics: bf16 matmul operands, f32 accumulation/epilogues, bf16 h."""
    def mm(a, w):
        return jnp.dot(a.astype(jnp.bfloat16), w.astype(jnp.bfloat16),
                       preferred_element_type=jnp.float32)
    h = jnp.maximum(_ln(mm(x, params["w1_t"]) + params["b1"],
                        params["ln1_g"], params["ln1_b"]), 0.0).astype(jnp.bfloat16)
    h = jnp.maximum(_ln(mm(h, params["w2_t"]) + params["b2"],
                        params["ln2_g"], params["ln2_b"]), 0.0).astype(jnp.bfloat16)
    return x + mm(h, params["w3_t"]) + params["b3"]


# ---------------------------------------------------------------------------
# Deterministic parameter construction
# ---------------------------------------------------------------------------

def init_params(key, hid_dim):
    F = 4 * hid_dim
    ks = jax.random.split(key, 10)
    scale = 0.1

    def w(k, shape):
        return (scale * jax.random.normal(k, shape)).astype(jnp.float32)

    return {
        # nn.Linear weights are (out, in) in PyTorch -> stored transposed (in, out) here.
        "w1_t": w(ks[0], (hid_dim, F)),
        "b1": w(ks[1], (F,)),
        "ln1_g": (1.0 + 0.1 * jax.random.normal(ks[2], (F,))).astype(jnp.float32),
        "ln1_b": w(ks[3], (F,)),
        "w2_t": w(ks[4], (F, F)),
        "b2": w(ks[5], (F,)),
        "ln2_g": (1.0 + 0.1 * jax.random.normal(ks[6], (F,))).astype(jnp.float32),
        "ln2_b": w(ks[7], (F,)),
        "w3_t": w(ks[8], (F, hid_dim)),
        "b3": w(ks[9], (hid_dim,)),
    }


if __name__ == "__main__":
    # batch=20 exercises M padding + the >=2 M-tile split; 4*hid=512 exercises K tiling.
    batch, hid_dim = 20, 128

    key = jax.random.PRNGKey(0)
    k_x, k_p = jax.random.split(key)
    x = jax.random.normal(k_x, (batch, hid_dim), dtype=jnp.float32)
    params = init_params(k_p, hid_dim)

    out = feedforward_block(x, params)
    out = jax.block_until_ready(out)

    # Tight check vs. a reference with identical mixed precision (bf16 operands, f32 accum).
    ref_mixed = reference_mixed(x, params)
    np.testing.assert_allclose(np.asarray(out), np.asarray(ref_mixed), rtol=1e-2, atol=1e-2)

    # Loose sanity check vs. the strict f32 reference (bf16 operand rounding ~1e-2 scale).
    ref_f32 = reference_forward(x, params)
    np.testing.assert_allclose(np.asarray(out), np.asarray(ref_f32), rtol=0.0, atol=0.25)

    print("KERNEL_OK")
</pallas_src>

<mosaic_0001>
module attributes {stable_mosaic.version = 11 : i64} {
  func.func @_linear_ln_relu_kernel(%arg0: i32, %arg1: i32, %arg2: memref<16x128xbf16, #tpu.memory_space<vmem>>, %arg3: memref<128x512xbf16, #tpu.memory_space<vmem>>, %arg4: memref<1x512xf32, #tpu.memory_space<vmem>>, %arg5: memref<1x512xf32, #tpu.memory_space<vmem>>, %arg6: memref<1x512xf32, #tpu.memory_space<vmem>>, %arg7: memref<16x512xbf16, #tpu.memory_space<vmem>>, %arg8: memref<16x512xf32, #tpu.memory_space<vmem>>) attributes {dimension_semantics = [#tpu.dimension_semantics<parallel>, #tpu.dimension_semantics<arbitrary>], iteration_bounds = array<i64: 2, 1>, scalar_prefetch = 0 : i64, scratch_operands = 1 : i64, tpu.core_type = #tpu.core_type<tc>, window_params = [{transform_indices = @transform_0, window_bounds = array<i64: 16, 128>}, {transform_indices = @transform_1, window_bounds = array<i64: 128, 512>}, {pipeline_mode = #tpu.pipeline_mode<synchronous>, transform_indices = @transform_2, window_bounds = array<i64: 1, 512>}, {pipeline_mode = #tpu.pipeline_mode<synchronous>, transform_indices = @transform_3, window_bounds = array<i64: 1, 512>}, {pipeline_mode = #tpu.pipeline_mode<synchronous>, transform_indices = @transform_4, window_bounds = array<i64: 1, 512>}, {transform_indices = @transform_5, window_bounds = array<i64: 16, 512>}]} {
    %c0_i32 = arith.constant 0 : i32
    %0 = arith.cmpi eq, %arg1, %c0_i32 : i32
    %1 = arith.extui %0 : i1 to i32
    %c0_i32_0 = arith.constant 0 : i32
    %2 = arith.cmpi ne, %1, %c0_i32_0 : i32
    scf.if %2 {
      %c0_10 = arith.constant 0 : index
      %c0_11 = arith.constant 0 : index
      %12 = vector.load %arg4[%c0_10, %c0_11] : memref<1x512xf32, #tpu.memory_space<vmem>>, vector<1x512xf32>
      %13 = vector.shape_cast %12 : vector<1x512xf32> to vector<1x512xf32>
      %14 = vector.broadcast %13 : vector<1x512xf32> to vector<16x512xf32>
      %c0_12 = arith.constant 0 : index
      %c0_13 = arith.constant 0 : index
      %15 = vector.load %arg8[%c0_12, %c0_13] : memref<16x512xf32, #tpu.memory_space<vmem>>, vector<16x512xf32>
      tpu.vector_store %arg8[%c0_12, %c0_13], %14 {strides = array<i32>} : memref<16x512xf32, #tpu.memory_space<vmem>>, vector<16x512xf32>,
    } else {
    }
    %c0 = arith.constant 0 : index
    %c0_1 = arith.constant 0 : index
    %3 = vector.load %arg8[%c0, %c0_1] : memref<16x512xf32, #tpu.memory_space<vmem>>, vector<16x512xf32>
    %c0_2 = arith.constant 0 : index
    %c0_3 = arith.constant 0 : index
    %4 = vector.load %arg2[%c0_2, %c0_3] : memref<16x128xbf16, #tpu.memory_space<vmem>>, vector<16x128xbf16>
    %c0_4 = arith.constant 0 : index
    %c0_5 = arith.constant 0 : index
    %5 = vector.load %arg3[%c0_4, %c0_5] : memref<128x512xbf16, #tpu.memory_space<vmem>>, vector<128x512xbf16>
    %cst = arith.constant dense<0.000000e+00> : vector<16x512xf32>
    %6 = tpu.matmul %4, %5, %cst {dimension_numbers = #tpu.dot_dimension_numbers<[1], [0], [0], [1], [0, 0, 1, 1], [], []>} : vector<16x128xbf16>, vector<128x512xbf16>, vector<16x512xf32> -> vector<16x512xf32>
    %7 = arith.addf %3, %6 : vector<16x512xf32>
    %c0_6 = arith.constant 0 : index
    %c0_7 = arith.constant 0 : index
    %8 = vector.load %arg8[%c0_6, %c0_7] : memref<16x512xf32, #tpu.memory_space<vmem>>, vector<16x512xf32>
    tpu.vector_store %arg8[%c0_6, %c0_7], %7 {strides = array<i32>} : memref<16x512xf32, #tpu.memory_space<vmem>>, vector<16x512xf32>,
    %c0_i32_8 = arith.constant 0 : i32
    %9 = arith.cmpi eq, %arg1, %c0_i32_8 : i32
    %10 = arith.extui %9 : i1 to i32
    %c0_i32_9 = arith.constant 0 : i32
    %11 = arith.cmpi ne, %10, %c0_i32_9 : i32
    scf.if %11 {
      %c0_10 = arith.constant 0 : index
      %c0_11 = arith.constant 0 : index
      %12 = vector.load %arg8[%c0_10, %c0_11] : memref<16x512xf32, #tpu.memory_space<vmem>>, vector<16x512xf32>
      %cst_12 = arith.constant dense<0.000000e+00> : vector<16xf32>
      %13 = vector.multi_reduction <add>, %12, %cst_12 [1] : vector<16x512xf32> to vector<16xf32>
      %14 = vector.shape_cast %13 : vector<16xf32> to vector<16x1xf32>
      %cst_13 = arith.constant 5.120000e+02 : f32
      %15 = vector.broadcast %cst_13 : f32 to vector<16x1xf32>
      %16 = arith.divf %14, %15 : vector<16x1xf32>
      %17 = vector.broadcast %16 : vector<16x1xf32> to vector<16x512xf32>
      %18 = arith.subf %12, %17 : vector<16x512xf32>
      %19 = arith.mulf %18, %18 : vector<16x512xf32>
      %cst_14 = arith.constant dense<0.000000e+00> : vector<16xf32>
      %20 = vector.multi_reduction <add>, %19, %cst_14 [1] : vector<16x512xf32> to vector<16xf32>
      %21 = vector.shape_cast %20 : vector<16xf32> to vector<16x1xf32>
      %cst_15 = arith.constant 5.120000e+02 : f32
      %22 = vector.broadcast %cst_15 : f32 to vector<16x1xf32>
      %23 = arith.divf %21, %22 : vector<16x1xf32>
      %cst_16 = arith.constant 9.99999974E-6 : f32
      %24 = vector.broadcast %cst_16 : f32 to vector<16x1xf32>
      %25 = arith.addf %23, %24 : vector<16x1xf32>
      %26 = math.rsqrt %25 : vector<16x1xf32>
      %27 = vector.broadcast %26 : vector<16x1xf32> to vector<16x512xf32>
      %28 = arith.mulf %18, %27 : vector<16x512xf32>
      %c0_17 = arith.constant 0 : index
      %c0_18 = arith.constant 0 : index
      %29 = vector.load %arg5[%c0_17, %c0_18] : memref<1x512xf32, #tpu.memory_space<vmem>>, vector<1x512xf32>
      %30 = vector.broadcast %29 : vector<1x512xf32> to vector<16x512xf32>
      %31 = arith.mulf %28, %30 : vector<16x512xf32>
      %c0_19 = arith.constant 0 : index
      %c0_20 = arith.constant 0 : index
      %32 = vector.load %arg6[%c0_19, %c0_20] : memref<1x512xf32, #tpu.memory_space<vmem>>, vector<1x512xf32>
      %33 = vector.broadcast %32 : vector<1x512xf32> to vector<16x512xf32>
      %34 = arith.addf %31, %33 : vector<16x512xf32>
      %cst_21 = arith.constant 0.000000e+00 : f32
      %35 = vector.broadcast %cst_21 : f32 to vector<16x512xf32>
      %36 = arith.maximumf %34, %35 : vector<16x512xf32>
      %37 = arith.truncf %36 : vector<16x512xf32> to vector<16x512xbf16>
      %c0_22 = arith.constant 0 : index
      %c0_23 = arith.constant 0 : index
      %38 = vector.load %arg7[%c0_22, %c0_23] : memref<16x512xbf16, #tpu.memory_space<vmem>>, vector<16x512xbf16>
      tpu.vector_store %arg7[%c0_22, %c0_23], %37 {strides = array<i32>} : memref<16x512xbf16, #tpu.memory_space<vmem>>, vector<16x512xbf16>,
    } else {
    }
    return
  }
  func.func @transform_0(%arg0: i32, %arg1: i32) -> (i32, i32) {
    %c0_i32 = arith.constant 0 : i32
    return %arg0, %arg1 : i32, i32
  }
  func.func @transform_1(%arg0: i32, %arg1: i32) -> (i32, i32) {
    %c0_i32 = arith.constant 0 : i32
    %c0_i32_0 = arith.constant 0 : i32
    return %arg1, %c0_i32 : i32, i32
  }
  func.func @transform_2(%arg0: i32, %arg1: i32) -> (i32, i32) {
    %c0_i32 = arith.constant 0 : i32
    %c0_i32_0 = arith.constant 0 : i32
    %c0_i32_1 = arith.constant 0 : i32
    return %c0_i32, %c0_i32_0 : i32, i32
  }
  func.func @transform_3(%arg0: i32, %arg1: i32) -> (i32, i32) {
    %c0_i32 = arith.constant 0 : i32
    %c0_i32_0 = arith.constant 0 : i32
    %c0_i32_1 = arith.constant 0 : i32
    return %c0_i32, %c0_i32_0 : i32, i32
  }
  func.func @transform_4(%arg0: i32, %arg1: i32) -> (i32, i32) {
    %c0_i32 = arith.constant 0 : i32
    %c0_i32_0 = arith.constant 0 : i32
    %c0_i32_1 = arith.constant 0 : i32
    return %c0_i32, %c0_i32_0 : i32, i32
  }
  func.func @transform_5(%arg0: i32, %arg1: i32) -> (i32, i32) {
    %c0_i32 = arith.constant 0 : i32
    %c0_i32_0 = arith.constant 0 : i32
    return %arg0, %c0_i32 : i32, i32
  }
}

module attributes {stable_mosaic.version = 11 : i64} {
  func.func @_linear_ln_relu_kernel(%arg0: i32, %arg1: i32, %arg2: memref<16x512xbf16, #tpu.memory_space<vmem>>, %arg3: memref<512x512xbf16, #tpu.memory_space<vmem>>, %arg4: memref<1x512xf32, #tpu.memory_space<vmem>>, %arg5: memref<1x512xf32, #tpu.memory_space<vmem>>, %arg6: memref<1x512xf32, #tpu.memory_space<vmem>>, %arg7: memref<16x512xbf16, #tpu.memory_space<vmem>>, %arg8: memref<16x512xf32, #tpu.memory_space<vmem>>) attributes {dimension_semantics = [#tpu.dimension_semantics<parallel>, #tpu.dimension_semantics<arbitrary>], iteration_bounds = array<i64: 2, 1>, scalar_prefetch = 0 : i64, scratch_operands = 1 : i64, tpu.core_type = #tpu.core_type<tc>, window_params = [{transform_indices = @transform_0, window_bounds = array<i64: 16, 512>}, {transform_indices = @transform_1, window_bounds = array<i64: 512, 512>}, {pipeline_mode = #tpu.pipeline_mode<synchronous>, transform_indices = @transform_2, window_bounds = array<i64: 1, 512>}, {pipeline_mode = #tpu.pipeline_mode<synchronous>, transform_indices = @transform_3, window_bounds = array<i64: 1, 512>}, {pipeline_mode = #tpu.pipeline_mode<synchronous>, transform_indices = @transform_4, window_bounds = array<i64: 1, 512>}, {transform_indices = @transform_5, window_bounds = array<i64: 16, 512>}]} {
    %c0_i32 = arith.constant 0 : i32
    %0 = arith.cmpi eq, %arg1, %c0_i32 : i32
    %1 = arith.extui %0 : i1 to i32
    %c0_i32_0 = arith.constant 0 : i32
    %2 = arith.cmpi ne, %1, %c0_i32_0 : i32
    scf.if %2 {
      %c0_10 = arith.constant 0 : index
      %c0_11 = arith.constant 0 : index
      %12 = vector.load %arg4[%c0_10, %c0_11] : memref<1x512xf32, #tpu.memory_space<vmem>>, vector<1x512xf32>
      %13 = vector.shape_cast %12 : vector<1x512xf32> to vector<1x512xf32>
      %14 = vector.broadcast %13 : vector<1x512xf32> to vector<16x512xf32>
      %c0_12 = arith.constant 0 : index
      %c0_13 = arith.constant 0 : index
      %15 = vector.load %arg8[%c0_12, %c0_13] : memref<16x512xf32, #tpu.memory_space<vmem>>, vector<16x512xf32>
      tpu.vector_store %arg8[%c0_12, %c0_13], %14 {strides = array<i32>} : memref<16x512xf32, #tpu.memory_space<vmem>>, vector<16x512xf32>,
    } else {
    }
    %c0 = arith.constant 0 : index
    %c0_1 = arith.constant 0 : index
    %3 = vector.load %arg8[%c0, %c0_1] : memref<16x512xf32, #tpu.memory_space<vmem>>, vector<16x512xf32>
    %c0_2 = arith.constant 0 : index
    %c0_3 = arith.constant 0 : index
    %4 = vector.load %arg2[%c0_2, %c0_3] : memref<16x512xbf16, #tpu.memory_space<vmem>>, vector<16x512xbf16>
    %c0_4 = arith.constant 0 : index
    %c0_5 = arith.constant 0 : index
    %5 = vector.load %arg3[%c0_4, %c0_5] : memref<512x512xbf16, #tpu.memory_space<vmem>>, vector<512x512xbf16>
    %cst = arith.constant dense<0.000000e+00> : vector<16x512xf32>
    %6 = tpu.matmul %4, %5, %cst {dimension_numbers = #tpu.dot_dimension_numbers<[1], [0], [0], [1], [0, 0, 1, 1], [], []>} : vector<16x512xbf16>, vector<512x512xbf16>, vector<16x512xf32> -> vector<16x512xf32>
    %7 = arith.addf %3, %6 : vector<16x512xf32>
    %c0_6 = arith.constant 0 : index
    %c0_7 = arith.constant 0 : index
    %8 = vector.load %arg8[%c0_6, %c0_7] : memref<16x512xf32, #tpu.memory_space<vmem>>, vector<16x512xf32>
    tpu.vector_store %arg8[%c0_6, %c0_7], %7 {strides = array<i32>} : memref<16x512xf32, #tpu.memory_space<vmem>>, vector<16x512xf32>,
    %c0_i32_8 = arith.constant 0 : i32
    %9 = arith.cmpi eq, %arg1, %c0_i32_8 : i32
    %10 = arith.extui %9 : i1 to i32
    %c0_i32_9 = arith.constant 0 : i32
    %11 = arith.cmpi ne, %10, %c0_i32_9 : i32
    scf.if %11 {
      %c0_10 = arith.constant 0 : index
      %c0_11 = arith.constant 0 : index
      %12 = vector.load %arg8[%c0_10, %c0_11] : memref<16x512xf32, #tpu.memory_space<vmem>>, vector<16x512xf32>
      %cst_12 = arith.constant dense<0.000000e+00> : vector<16xf32>
      %13 = vector.multi_reduction <add>, %12, %cst_12 [1] : vector<16x512xf32> to vector<16xf32>
      %14 = vector.shape_cast %13 : vector<16xf32> to vector<16x1xf32>
      %cst_13 = arith.constant 5.120000e+02 : f32
      %15 = vector.broadcast %cst_13 : f32 to vector<16x1xf32>
      %16 = arith.divf %14, %15 : vector<16x1xf32>
      %17 = vector.broadcast %16 : vector<16x1xf32> to vector<16x512xf32>
      %18 = arith.subf %12, %17 : vector<16x512xf32>
      %19 = arith.mulf %18, %18 : vector<16x512xf32>
      %cst_14 = arith.constant dense<0.000000e+00> : vector<16xf32>
      %20 = vector.multi_reduction <add>, %19, %cst_14 [1] : vector<16x512xf32> to vector<16xf32>
      %21 = vector.shape_cast %20 : vector<16xf32> to vector<16x1xf32>
      %cst_15 = arith.constant 5.120000e+02 : f32
      %22 = vector.broadcast %cst_15 : f32 to vector<16x1xf32>
      %23 = arith.divf %21, %22 : vector<16x1xf32>
      %cst_16 = arith.constant 9.99999974E-6 : f32
      %24 = vector.broadcast %cst_16 : f32 to vector<16x1xf32>
      %25 = arith.addf %23, %24 : vector<16x1xf32>
      %26 = math.rsqrt %25 : vector<16x1xf32>
      %27 = vector.broadcast %26 : vector<16x1xf32> to vector<16x512xf32>
      %28 = arith.mulf %18, %27 : vector<16x512xf32>
      %c0_17 = arith.constant 0 : index
      %c0_18 = arith.constant 0 : index
      %29 = vector.load %arg5[%c0_17, %c0_18] : memref<1x512xf32, #tpu.memory_space<vmem>>, vector<1x512xf32>
      %30 = vector.broadcast %29 : vector<1x512xf32> to vector<16x512xf32>
      %31 = arith.mulf %28, %30 : vector<16x512xf32>
      %c0_19 = arith.constant 0 : index
      %c0_20 = arith.constant 0 : index
      %32 = vector.load %arg6[%c0_19, %c0_20] : memref<1x512xf32, #tpu.memory_space<vmem>>, vector<1x512xf32>
      %33 = vector.broadcast %32 : vector<1x512xf32> to vector<16x512xf32>
      %34 = arith.addf %31, %33 : vector<16x512xf32>
      %cst_21 = arith.constant 0.000000e+00 : f32
      %35 = vector.broadcast %cst_21 : f32 to vector<16x512xf32>
      %36 = arith.maximumf %34, %35 : vector<16x512xf32>
      %37 = arith.truncf %36 : vector<16x512xf32> to vector<16x512xbf16>
      %c0_22 = arith.constant 0 : index
      %c0_23 = arith.constant 0 : index
      %38 = vector.load %arg7[%c0_22, %c0_23] : memref<16x512xbf16, #tpu.memory_space<vmem>>, vector<16x512xbf16>
      tpu.vector_store %arg7[%c0_22, %c0_23], %37 {strides = array<i32>} : memref<16x512xbf16, #tpu.memory_space<vmem>>, vector<16x512xbf16>,
    } else {
    }
    return
  }
  func.func @transform_0(%arg0: i32, %arg1: i32) -> (i32, i32) {
    %c0_i32 = arith.constant 0 : i32
    return %arg0, %arg1 : i32, i32
  }
  func.func @transform_1(%arg0: i32, %arg1: i32) -> (i32, i32) {
    %c0_i32 = arith.constant 0 : i32
    %c0_i32_0 = arith.constant 0 : i32
    return %arg1, %c0_i32 : i32, i32
  }
  func.func @transform_2(%arg0: i32, %arg1: i32) -> (i32, i32) {
    %c0_i32 = arith.constant 0 : i32
    %c0_i32_0 = arith.constant 0 : i32
    %c0_i32_1 = arith.constant 0 : i32
    return %c0_i32, %c0_i32_0 : i32, i32
  }
  func.func @transform_3(%arg0: i32, %arg1: i32) -> (i32, i32) {
    %c0_i32 = arith.constant 0 : i32
    %c0_i32_0 = arith.constant 0 : i32
    %c0_i32_1 = arith.constant 0 : i32
    return %c0_i32, %c0_i32_0 : i32, i32
  }
  func.func @transform_4(%arg0: i32, %arg1: i32) -> (i32, i32) {
    %c0_i32 = arith.constant 0 : i32
    %c0_i32_0 = arith.constant 0 : i32
    %c0_i32_1 = arith.constant 0 : i32
    return %c0_i32, %c0_i32_0 : i32, i32
  }
  func.func @transform_5(%arg0: i32, %arg1: i32) -> (i32, i32) {
    %c0_i32 = arith.constant 0 : i32
    %c0_i32_0 = arith.constant 0 : i32
    return %arg0, %c0_i32 : i32, i32
  }
}

module attributes {stable_mosaic.version = 11 : i64} {
  func.func @_linear_residual_kernel(%arg0: i32, %arg1: i32, %arg2: memref<16x512xbf16, #tpu.memory_space<vmem>>, %arg3: memref<512x128xbf16, #tpu.memory_space<vmem>>, %arg4: memref<1x128xf32, #tpu.memory_space<vmem>>, %arg5: memref<16x128xf32, #tpu.memory_space<vmem>>, %arg6: memref<16x128xf32, #tpu.memory_space<vmem>>, %arg7: memref<16x128xf32, #tpu.memory_space<vmem>>) attributes {dimension_semantics = [#tpu.dimension_semantics<parallel>, #tpu.dimension_semantics<arbitrary>], iteration_bounds = array<i64: 2, 1>, scalar_prefetch = 0 : i64, scratch_operands = 1 : i64, tpu.core_type = #tpu.core_type<tc>, window_params = [{transform_indices = @transform_0, window_bounds = array<i64: 16, 512>}, {transform_indices = @transform_1, window_bounds = array<i64: 512, 128>}, {pipeline_mode = #tpu.pipeline_mode<synchronous>, transform_indices = @transform_2, window_bounds = array<i64: 1, 128>}, {pipeline_mode = #tpu.pipeline_mode<synchronous>, transform_indices = @transform_3, window_bounds = array<i64: 16, 128>}, {transform_indices = @transform_4, window_bounds = array<i64: 16, 128>}]} {
    %c0_i32 = arith.constant 0 : i32
    %0 = arith.cmpi eq, %arg1, %c0_i32 : i32
    %1 = arith.extui %0 : i1 to i32
    %c0_i32_0 = arith.constant 0 : i32
    %2 = arith.cmpi ne, %1, %c0_i32_0 : i32
    scf.if %2 {
      %c0_10 = arith.constant 0 : index
      %c0_11 = arith.constant 0 : index
      %12 = vector.load %arg4[%c0_10, %c0_11] : memref<1x128xf32, #tpu.memory_space<vmem>>, vector<1x128xf32>
      %13 = vector.shape_cast %12 : vector<1x128xf32> to vector<1x128xf32>
      %14 = vector.broadcast %13 : vector<1x128xf32> to vector<16x128xf32>
      %c0_12 = arith.constant 0 : index
      %c0_13 = arith.constant 0 : index
      %15 = vector.load %arg7[%c0_12, %c0_13] : memref<16x128xf32, #tpu.memory_space<vmem>>, vector<16x128xf32>
      tpu.vector_store %arg7[%c0_12, %c0_13], %14 {strides = array<i32>} : memref<16x128xf32, #tpu.memory_space<vmem>>, vector<16x128xf32>,
    } else {
    }
    %c0 = arith.constant 0 : index
    %c0_1 = arith.constant 0 : index
    %3 = vector.load %arg7[%c0, %c0_1] : memref<16x128xf32, #tpu.memory_space<vmem>>, vector<16x128xf32>
    %c0_2 = arith.constant 0 : index
    %c0_3 = arith.constant 0 : index
    %4 = vector.load %arg2[%c0_2, %c0_3] : memref<16x512xbf16, #tpu.memory_space<vmem>>, vector<16x512xbf16>
    %c0_4 = arith.constant 0 : index
    %c0_5 = arith.constant 0 : index
    %5 = vector.load %arg3[%c0_4, %c0_5] : memref<512x128xbf16, #tpu.memory_space<vmem>>, vector<512x128xbf16>
    %cst = arith.constant dense<0.000000e+00> : vector<16x128xf32>
    %6 = tpu.matmul %4, %5, %cst {dimension_numbers = #tpu.dot_dimension_numbers<[1], [0], [0], [1], [0, 0, 1, 1], [], []>} : vector<16x512xbf16>, vector<512x128xbf16>, vector<16x128xf32> -> vector<16x128xf32>
    %7 = arith.addf %3, %6 : vector<16x128xf32>
    %c0_6 = arith.constant 0 : index
    %c0_7 = arith.constant 0 : index
    %8 = vector.load %arg7[%c0_6, %c0_7] : memref<16x128xf32, #tpu.memory_space<vmem>>, vector<16x128xf32>
    tpu.vector_store %arg7[%c0_6, %c0_7], %7 {strides = array<i32>} : memref<16x128xf32, #tpu.memory_space<vmem>>, vector<16x128xf32>,
    %c0_i32_8 = arith.constant 0 : i32
    %9 = arith.cmpi eq, %arg1, %c0_i32_8 : i32
    %10 = arith.extui %9 : i1 to i32
    %c0_i32_9 = arith.constant 0 : i32
    %11 = arith.cmpi ne, %10, %c0_i32_9 : i32
    scf.if %11 {
      %c0_10 = arith.constant 0 : index
      %c0_11 = arith.constant 0 : index
      %12 = vector.load %arg7[%c0_10, %c0_11] : memref<16x128xf32, #tpu.memory_space<vmem>>, vector<16x128xf32>
      %c0_12 = arith.constant 0 : index
      %c0_13 = arith.constant 0 : index
      %13 = vector.load %arg5[%c0_12, %c0_13] : memref<16x128xf32, #tpu.memory_space<vmem>>, vector<16x128xf32>
      %14 = arith.addf %12, %13 : vector<16x128xf32>
      %c0_14 = arith.constant 0 : index
      %c0_15 = arith.constant 0 : index
      %15 = vector.load %arg6[%c0_14, %c0_15] : memref<16x128xf32, #tpu.memory_space<vmem>>, vector<16x128xf32>
      tpu.vector_store %arg6[%c0_14, %c0_15], %14 {strides = array<i32>} : memref<16x128xf32, #tpu.memory_space<vmem>>, vector<16x128xf32>,
    } else {
    }
    return
  }
  func.func @transform_0(%arg0: i32, %arg1: i32) -> (i32, i32) {
    %c0_i32 = arith.constant 0 : i32
    return %arg0, %arg1 : i32, i32
  }
  func.func @transform_1(%arg0: i32, %arg1: i32) -> (i32, i32) {
    %c0_i32 = arith.constant 0 : i32
    %c0_i32_0 = arith.constant 0 : i32
    return %arg1, %c0_i32 : i32, i32
  }
  func.func @transform_2(%arg0: i32, %arg1: i32) -> (i32, i32) {
    %c0_i32 = arith.constant 0 : i32
    %c0_i32_0 = arith.constant 0 : i32
    %c0_i32_1 = arith.constant 0 : i32
    return %c0_i32, %c0_i32_0 : i32, i32
  }
  func.func @transform_3(%arg0: i32, %arg1: i32) -> (i32, i32) {
    %c0_i32 = arith.constant 0 : i32
    %c0_i32_0 = arith.constant 0 : i32
    return %arg0, %c0_i32 : i32, i32
  }
  func.func @transform_4(%arg0: i32, %arg1: i32) -> (i32, i32) {
    %c0_i32 = arith.constant 0 : i32
    %c0_i32_0 = arith.constant 0 : i32
    return %arg0, %c0_i32 : i32, i32
  }
}

</mosaic_0001>

<llo_original>
// kernel: feedforward_block.3
$region0: #{feedforward_block.3}
  #allocation0 [shape = 'u32[]', space=smem, size = 0x4, offset = 0x4, fixed_abs, tag = 'smem constant byte address 0x4 - core index']
  #allocation1 [shape = 'u32[144,128]{1,0:T(1,128)}', space=vmem, size = 0x12000, scoped, tag = 'internal scratch']
  #allocation2 [shape = 'f32[16,512]{1,0:T(8,128)}', space=vmem, size = 0x8000, scoped, tag = 'scratch operand']
  %s0 = inlined_call_operand.vmem [shape: bf16[32,128], index: 0, kind: input, shape index: {}]
  %s1 = inlined_call_operand.vmem [shape: bf16[128,512], index: 1, kind: input, shape index: {}]
  %s2 = inlined_call_operand.vmem [shape: f32[1,512], index: 2, kind: input, shape index: {}]
  %s3 = inlined_call_operand.vmem [shape: f32[1,512], index: 3, kind: input, shape index: {}]
  %s4 = inlined_call_operand.vmem [shape: f32[1,512], index: 4, kind: input, shape index: {}]
  %s5 = inlined_call_operand.vmem [shape: bf16[32,512], index: 5, kind: output, shape index: {}]
  %s6 = sld [smem:[#allocation0]]
  $region61: #{feedforward_block.3} parent=0
    _
  %s8 = ssub.s32 1, %s6
  %s9 = scalar_select 0, %s8, %s6
  loop: start=0, step=1, limit=4
  $region2: #{feedforward_block.3} parent=0 // loop_pre_header
    _
  $region3: #{feedforward_block.3} parent=0 // loop_header
    %s11 = sphi 0, %s15
    %p12 = scmp.ge.s32.totalorder %s11, 4
    %s18 = sphi 0, %s30
    %s19 = sphi 0, %s26
    %s20 = sphi 0, %s18
    %s21 = sphi 0, %s19
    %s22 = sphi 0, %s20
    %s23 = sphi 0, %s21
    %s35 = sphi 0, %s37
    %s38 = sphi 0, %s35
    %s39 = sphi 0, %s38
    %s55 = sphi 0, %s39
    %s61 = sphi 0, %s63
    %s64 = sphi 0, %s61
    %s65 = sphi 0, %s64
    %s81 = sphi 0, %s65
    %s85 = sphi 0, %s85
    %s87 = sphi 0, %s85
    %s88 = sphi 0, %s87
    %s102 = sphi 0, %s88
    %s106 = sphi 0, %s106
    %s108 = sphi 0, %s106
    %s109 = sphi 0, %s108
    %s123 = sphi 0, %s109
    %s127 = sphi 0, %s127
    %s129 = sphi 0, %s127
    %s130 = sphi 0, %s129
    %s144 = sphi 0, %s130
    %s150 = sphi 0, %s152
    %s153 = sphi 0, %s150
    %s154 = sphi 0, %s153
    %s170 = sphi 0, %s154
  $region4: #{feedforward_block.3} parent=0 // loop_header_branch
    %14 = sbr.rel (%p12) target = $region8
  $region5: #{feedforward_block.3} parent=0 // loop_body
    %s16 = ssub.s32 %s11, 1
    %s17 = ssub.s32 %s11, 2
    %s24 = sadd.s32 1, %s19
    %p25 = scmp.ge.s32.totalorder %s24, 1
    %s26 = scalar_select %p25, 0, %s24
    %s27 = sadd.s32 1, %s18
    %s28 = scalar_select %p25, %s27, %s18
    %p29 = scmp.ge.s32.totalorder %s28, 2
    %s30 = scalar_select %p29, 0, %s28
    %s31 = ssub.s32 %s18, %s30
    %s32 = ssub.s32 %s19, %s26
    %s33 = sor.u32 %s31, %s32
    %p34 = scmp.eq.s32.totalorder %s33, 0
    %s36 = sadd.s32 %s35, 1
    %s37 = scalar_select %p34, %s35, %s36
    %p40 = pneg %p34
    %p41 = scmp.eq.s32.totalorder %s11, 1
    %p42 = por %p40, %p41
    %p43 = scmp.ne.s32.totalorder %s35, %s38
    %p44 = scmp.eq.s32.totalorder %s11, 0
    %p45 = por %p43, %p44
    %p46 = scmp.ne.s32.totalorder %s35, %s38
    %p47 = scmp.eq.s32.totalorder %s16, 1
    %p48 = por %p46, %p47
    %p49 = scmp.ne.s32.totalorder %s38, %s39
    %p50 = scmp.eq.s32.totalorder %s16, 0
    %p51 = por %p49, %p50
    %p52 = scmp.ne.s32.totalorder %s38, %s39
    %p53 = scmp.eq.s32.totalorder %s17, 1
    %p54 = por %p52, %p53
    %p56 = scmp.ne.s32.totalorder %s39, %s55
    %p57 = scmp.eq.s32.totalorder %s17, 0
    %p58 = por %p56, %p57
    %s59 = ssub.s32 %s19, %s26
    %p60 = scmp.eq.s32.totalorder %s59, 0
    %s62 = sadd.s32 %s61, 1
    %s63 = scalar_select %p60, %s61, %s62
    %p66 = pneg %p60
    %p67 = scmp.eq.s32.totalorder %s11, 1
    %p68 = por %p66, %p67
    %p69 = scmp.ne.s32.totalorder %s61, %s64
    %p70 = scmp.eq.s32.totalorder %s11, 0
    %p71 = por %p69, %p70
    %p72 = scmp.ne.s32.totalorder %s61, %s64
    %p73 = scmp.eq.s32.totalorder %s16, 1
    %p74 = por %p72, %p73
    %p75 = scmp.ne.s32.totalorder %s64, %s65
    %p76 = scmp.eq.s32.totalorder %s16, 0
    %p77 = por %p75, %p76
    %p78 = scmp.ne.s32.totalorder %s64, %s65
    %p79 = scmp.eq.s32.totalorder %s17, 1
    %p80 = por %p78, %p79
    %p82 = scmp.ne.s32.totalorder %s65, %s81
    %p83 = scmp.eq.s32.totalorder %s17, 0
    %p84 = por %p82, %p83
    %s86 = sadd.s32 %s85, 1
    %p89 = scmp.eq.s32.totalorder %s11, 1
    %p90 = scmp.ne.s32.totalorder %s85, %s87
    %p91 = scmp.eq.s32.totalorder %s11, 0
    %p92 = por %p90, %p91
    %p93 = scmp.ne.s32.totalorder %s85, %s87
    %p94 = scmp.eq.s32.totalorder %s16, 1
    %p95 = por %p93, %p94
    %p96 = scmp.ne.s32.totalorder %s87, %s88
    %p97 = scmp.eq.s32.totalorder %s16, 0
    %p98 = por %p96, %p97
    %p99 = scmp.ne.s32.totalorder %s87, %s88
    %p100 = scmp.eq.s32.totalorder %s17, 1
    %p101 = por %p99, %p100
    %p103 = scmp.ne.s32.totalorder %s88, %s102
    %p104 = scmp.eq.s32.totalorder %s17, 0
    %p105 = por %p103, %p104
    %s107 = sadd.s32 %s106, 1
    %p110 = scmp.eq.s32.totalorder %s11, 1
    %p111 = scmp.ne.s32.totalorder %s106, %s108
    %p112 = scmp.eq.s32.totalorder %s11, 0
    %p113 = por %p111, %p112
    %p114 = scmp.ne.s32.totalorder %s106, %s108
    %p115 = scmp.eq.s32.totalorder %s16, 1
    %p116 = por %p114, %p115
    %p117 = scmp.ne.s32.totalorder %s108, %s109
    %p118 = scmp.eq.s32.totalorder %s16, 0
    %p119 = por %p117, %p118
    %p120 = scmp.ne.s32.totalorder %s108, %s109
    %p121 = scmp.eq.s32.totalorder %s17, 1
    %p122 = por %p120, %p121
    %p124 = scmp.ne.s32.totalorder %s109, %s123
    %p125 = scmp.eq.s32.totalorder %s17, 0
    %p126 = por %p124, %p125
    %s128 = sadd.s32 %s127, 1
    %p131 = scmp.eq.s32.totalorder %s11, 1
    %p132 = scmp.ne.s32.totalorder %s127, %s129
    %p133 = scmp.eq.s32.totalorder %s11, 0
    %p134 = por %p132, %p133
    %p135 = scmp.ne.s32.totalorder %s127, %s129
    %p136 = scmp.eq.s32.totalorder %s16, 1
    %p137 = por %p135, %p136
    %p138 = scmp.ne.s32.totalorder %s129, %s130
    %p139 = scmp.eq.s32.totalorder %s16, 0
    %p140 = por %p138, %p139
    %p141 = scmp.ne.s32.totalorder %s129, %s130
    %p142 = scmp.eq.s32.totalorder %s17, 1
    %p143 = por %p141, %p142
    %p145 = scmp.ne.s32.totalorder %s130, %s144
    %p146 = scmp.eq.s32.totalorder %s17, 0
    %p147 = por %p145, %p146
    %s148 = ssub.s32 %s18, %s30
    %p149 = scmp.eq.s32.totalorder %s148, 0
    %s151 = sadd.s32 %s150, 1
    %s152 = scalar_select %p149, %s150, %s151
    %p155 = pneg %p149
    %p156 = scmp.eq.s32.totalorder %s11, 1
    %p157 = por %p155, %p156
    %p158 = scmp.ne.s32.totalorder %s150, %s153
    %p159 = scmp.eq.s32.totalorder %s11, 0
    %p160 = por %p158, %p159
    %p161 = scmp.ne.s32.totalorder %s150, %s153
    %p162 = scmp.eq.s32.totalorder %s16, 1
    %p163 = por %p161, %p162
    %p164 = scmp.ne.s32.totalorder %s153, %s154
    %p165 = scmp.eq.s32.totalorder %s16, 0
    %p166 = por %p164, %p165
    %p167 = scmp.ne.s32.totalorder %s153, %s154
    %p168 = scmp.eq.s32.totalorder %s17, 1
    %p169 = por %p167, %p168
    %p171 = scmp.ne.s32.totalorder %s154, %s170
    %p172 = scmp.eq.s32.totalorder %s17, 0
    %p173 = por %p171, %p172
    %p174 = scmp.le.s32.totalorder 1, %s11
    %p175 = scmp.lt.s32.totalorder %s11, 3
    %p176 = pnand %p174, %p175
    %p177 = pneg %p176
    // Predicated region
    $region9: #{feedforward_block.3} parent=5 // pred_check
      _
    $region10: #{feedforward_block.3} parent=5 // pred_check_branch
      %179 = sbr.rel (%p176) target = $region12
    $region11: #{feedforward_block.3} parent=5 // pred_region
      %s180 = ssub.s32 %s11, 1
      // Predicated region
      $region13: #{feedforward_block.3} parent=11 // pred_check
        %p181 = pneg %p77
      $region14: #{feedforward_block.3} parent=11 // pred_check_branch
        %183 = sbr.rel (%p181) target = $region16
      $region15: #{feedforward_block.3} parent=11 // pred_region
        %s184 = smul.u32 16, %s21
        %p185 = scmp.lt.s32.totalorder %s184, 15
        %s186 = scalar_select %p185, %s184, 15
        %s187 = smul.addr %s186, 4
        %s188 = smul.addr %s187, 4
        %s189 = scalar_lea.vmem %s1, %s188
        %s190 = smul.u32 16, %s21
      $region16: #{feedforward_block.3} parent=11 // pred_fallthru
        _
      // Predicated region
      $region17: #{feedforward_block.3} parent=11 // pred_check
        %p191 = pneg %p98
      $region18: #{feedforward_block.3} parent=11 // pred_check_branch
        %193 = sbr.rel (%p191) target = $region20
      $region19: #{feedforward_block.3} parent=11 // pred_region
        _
      $region20: #{feedforward_block.3} parent=11 // pred_fallthru
        _
      // Predicated region
      $region21: #{feedforward_block.3} parent=11 // pred_check
        %p194 = pneg %p119
      $region22: #{feedforward_block.3} parent=11 // pred_check_branch
        %196 = sbr.rel (%p194) target = $region24
      $region23: #{feedforward_block.3} parent=11 // pred_region
        _
      $region24: #{feedforward_block.3} parent=11 // pred_fallthru
        _
      // Predicated region
      $region25: #{feedforward_block.3} parent=11 // pred_check
        %p197 = pneg %p140
      $region26: #{feedforward_block.3} parent=11 // pred_check_branch
        %199 = sbr.rel (%p197) target = $region28
      $region27: #{feedforward_block.3} parent=11 // pred_region
        _
      $region28: #{feedforward_block.3} parent=11 // pred_fallthru
        _
    $region12: #{feedforward_block.3} parent=5 // pred_fallthru
      _
    %p200 = scmp.lt.s32.totalorder %s11, 2
    // Predicated region
    $region29: #{feedforward_block.3} parent=5 // pred_check
      %p201 = pneg %p200
    $region30: #{feedforward_block.3} parent=5 // pred_check_branch
      %203 = sbr.rel (%p201) target = $region32
    $region31: #{feedforward_block.3} parent=5 // pred_region
      // Predicated region
      $region33: #{feedforward_block.3} parent=31 // pred_check
        %p204 = pneg %p45
      $region34: #{feedforward_block.3} parent=31 // pred_check_branch
        %206 = sbr.rel (%p204) target = $region36
      $region35: #{feedforward_block.3} parent=31 // pred_region
        %s207 = smul.u32 2, %s18
        %p208 = scmp.lt.s32.totalorder %s207, 3
        %s209 = scalar_select %p208, %s207, 3
        %p210 = scmp.lt.s32.totalorder %s19, 0
        %s211 = scalar_select %p210, %s19, 0
        %s212 = sadd.s32 %s211, %s209
        %s213 = smul.addr %s212, 4
        %s214 = scalar_lea.vmem %s0, %s213
        %s215 = smul.u32 2, %s18
      $region36: #{feedforward_block.3} parent=31 // pred_fallthru
        _
    $region32: #{feedforward_block.3} parent=5 // pred_fallthru
      _
    %p216 = scmp.le.s32.totalorder 1, %s11
    %p217 = scmp.lt.s32.totalorder %s11, 3
    %p218 = pnand %p216, %p217
    %p219 = pneg %p218
    // Predicated region
    $region37: #{feedforward_block.3} parent=5 // pred_check
      _
    $region38: #{feedforward_block.3} parent=5 // pred_check_branch
      %221 = sbr.rel (%p218) target = $region40
    $region39: #{feedforward_block.3} parent=5 // pred_region
      %s222 = ssub.s32 %s11, 1
      %s223 = smul.u32 2, %s20
      %p224 = scmp.lt.s32.totalorder %s223, 3
      %s225 = scalar_select %p224, %s223, 3
      %p226 = scmp.lt.s32.totalorder %s21, 0
      %s227 = scalar_select %p226, %s21, 0
      %s228 = sadd.s32 %s227, %s225
      %s229 = smul.addr %s228, 4
      %s230 = scalar_lea.vmem %s0, %s229
      %p231 = pneg %p51
      %p232 = pneg %p48
      %s233 = smul.u32 16, %s21
      %p234 = scmp.lt.s32.totalorder %s233, 15
      %s235 = scalar_select %p234, %s233, 15
      %s236 = smul.addr %s235, 4
      %s237 = smul.addr %s236, 4
      %s238 = scalar_lea.vmem %s1, %s237
      %p239 = pneg %p77
      %p240 = pneg %p74
      %p241 = pneg %p98
      %p242 = pneg %p95
      %p243 = pneg %p119
      %p244 = pneg %p116
      %p245 = pneg %p140
      %p246 = pneg %p137
      %p247 = pneg %p166
      %p248 = pneg %p163
      %s249 = smul.u32 2, %s20
      %p250 = scmp.lt.s32.totalorder %s249, 3
      %s251 = scalar_select %p250, %s249, 3
      %s252 = smul.addr %s251, 4
      %s253 = smul.addr %s252, 4
      %s254 = scalar_lea.vmem %s5, %s253
      %s255 = smul.u32 2, %s20
      %p256 = scmp.lt.s32.totalorder %s255, 3
      %s257 = scalar_select %p256, %s255, 3
      %p258 = scmp.lt.s32.totalorder %s21, 0
      %s259 = scalar_select %p258, %s21, 0
      %s260 = sadd.s32 %s259, %s257
      %s261 = smul.addr %s260, 4
      %s262 = scalar_lea.vmem %s0, %s261
      %s263 = smul.u32 2, %s20
      %s264 = smul.u32 16, %s21
      %p265 = scmp.lt.s32.totalorder %s264, 15
      %s266 = scalar_select %p265, %s264, 15
      %s267 = smul.addr %s266, 4
      %s268 = smul.addr %s267, 4
      %s269 = scalar_lea.vmem %s1, %s268
      %s270 = smul.u32 16, %s21
      %s271 = smul.u32 2, %s20
      %p272 = scmp.lt.s32.totalorder %s271, 3
      %s273 = scalar_select %p272, %s271, 3
      %s274 = smul.addr %s273, 4
      %s275 = smul.addr %s274, 4
      %s276 = scalar_lea.vmem %s5, %s275
      %s277 = smul.u32 2, %s20
      %p279 = scmp.eq.s32.totalorder %s21, 0
      // Predicated region
      $region41: #{feedforward_block.3} parent=39 // pred_check
        %p280 = pneg %p279
      $region42: #{feedforward_block.3} parent=39 // pred_check_branch
        %282 = sbr.rel (%p280) target = $region44
      $region43: #{feedforward_block.3} parent=39 // pred_region
        %v283 = vld [vmem:[%s2] sm:$0xf]
        %v285 = vlaneseq
        %v286 = vshrl.u32 %v285, 7
        %v287 = vsub.s32 0, %v286
        %v288 = vrot.slane %v283, %v287
        %v289 = vlaneseq
        %v290 = vshrl.u32 %v289, 7
        %v291 = vsub.s32 1, %v290
        %v292 = vrot.slane %v283, %v291
        %v293 = vlaneseq
        %v294 = vshrl.u32 %v293, 7
        %v295 = vsub.s32 2, %v294
        %v296 = vrot.slane %v283, %v295
        %v297 = vlaneseq
        %v298 = vshrl.u32 %v297, 7
        %v299 = vsub.s32 3, %v298
        %v300 = vrot.slane %v283, %v299
        %305 = vst [vmem:[#allocation2] sm:$0xff] %v288
        %306 = vst [vmem:[#allocation2 + $0x8] sm:$0xff] %v292
        %307 = vst [vmem:[#allocation2 + $0x10] sm:$0xff] %v296
        %308 = vst [vmem:[#allocation2 + $0x18] sm:$0xff] %v300
        %309 = vst [vmem:[#allocation2 + $0x20] sm:$0xff] %v288
        %310 = vst [vmem:[#allocation2 + $0x28] sm:$0xff] %v292
        %311 = vst [vmem:[#allocation2 + $0x30] sm:$0xff] %v296
        %312 = vst [vmem:[#allocation2 + $0x38] sm:$0xff] %v300
      $region44: #{feedforward_block.3} parent=39 // pred_fallthru
        _
      %v313 = vld [vmem:[#allocation2] sm:$0xff]
      %v314 = vld [vmem:[#allocation2 + $0x8] sm:$0xff]
      %v315 = vld [vmem:[#allocation2 + $0x10] sm:$0xff]
      %v316 = vld [vmem:[#allocation2 + $0x18] sm:$0xff]
      %v317 = vld [vmem:[#allocation2 + $0x20] sm:$0xff]
      %v318 = vld [vmem:[#allocation2 + $0x28] sm:$0xff]
      %v319 = vld [vmem:[#allocation2 + $0x30] sm:$0xff]
      %v320 = vld [vmem:[#allocation2 + $0x38] sm:$0xff]
      %v321 = vld [vmem:[%s262] sm:$0xf]
      %v322 = vld [vmem:[%s262 + $0x4] sm:$0xf]
      %v323 = vld [vmem:[%s269] sm:$0xff]
      %v324 = vld [vmem:[%s269 + $0x8] sm:$0xff]
      %v325 = vld [vmem:[%s269 + $0x10] sm:$0xff]
      %v326 = vld [vmem:[%s269 + $0x18] sm:$0xff]
      %v327 = vld [vmem:[%s269 + $0x20] sm:$0xff]
      %v328 = vld [vmem:[%s269 + $0x28] sm:$0xff]
      %v329 = vld [vmem:[%s269 + $0x30] sm:$0xff]
      %v330 = vld [vmem:[%s269 + $0x38] sm:$0xff]
      %v331 = vld [vmem:[%s269 + $0x40] sm:$0xff]
      %v332 = vld [vmem:[%s269 + $0x48] sm:$0xff]
      %v333 = vld [vmem:[%s269 + $0x50] sm:$0xff]
      %v334 = vld [vmem:[%s269 + $0x58] sm:$0xff]
      %v335 = vld [vmem:[%s269 + $0x60] sm:$0xff]
      %v336 = vld [vmem:[%s269 + $0x68] sm:$0xff]
      %v337 = vld [vmem:[%s269 + $0x70] sm:$0xff]
      %v338 = vld [vmem:[%s269 + $0x78] sm:$0xff]
      %v339 = vld [vmem:[%s269 + $0x80] sm:$0xff]
      %v340 = vld [vmem:[%s269 + $0x88] sm:$0xff]
      %v341 = vld [vmem:[%s269 + $0x90] sm:$0xff]
      %v342 = vld [vmem:[%s269 + $0x98] sm:$0xff]
      %v343 = vld [vmem:[%s269 + $0xa0] sm:$0xff]
      %v344 = vld [vmem:[%s269 + $0xa8] sm:$0xff]
      %v345 = vld [vmem:[%s269 + $0xb0] sm:$0xff]
      %v346 = vld [vmem:[%s269 + $0xb8] sm:$0xff]
      %v347 = vld [vmem:[%s269 + $0xc0] sm:$0xff]
      %v348 = vld [vmem:[%s269 + $0xc8] sm:$0xff]
      %v349 = vld [vmem:[%s269 + $0xd0] sm:$0xff]
      %v350 = vld [vmem:[%s269 + $0xd8] sm:$0xff]
      %v351 = vld [vmem:[%s269 + $0xe0] sm:$0xff]
      %v352 = vld [vmem:[%s269 + $0xe8] sm:$0xff]
      %v353 = vld [vmem:[%s269 + $0xf0] sm:$0xff]
      %v354 = vld [vmem:[%s269 + $0xf8] sm:$0xff]
      %v357 = vunpack.c.l.b16 %v321
      %v358 = vunpack.c.l.b16 %v322
      %v359 = vpack.c.b16 %v358, %v357
      %v393 = vunpack.c.l.b16 %v323
      %v394 = vunpack.c.h.b16 %v323
      %v395 = vunpack.c.l.b16 %v324
      %v396 = vunpack.c.h.b16 %v324
      %v397 = vunpack.c.l.b16 %v325
      %v398 = vunpack.c.h.b16 %v325
      %v399 = vunpack.c.l.b16 %v326
      %v400 = vunpack.c.h.b16 %v326
      %v401 = vunpack.c.l.b16 %v327
      %v402 = vunpack.c.h.b16 %v327
      %v403 = vunpack.c.l.b16 %v328
      %v404 = vunpack.c.h.b16 %v328
      %v405 = vunpack.c.l.b16 %v329
      %v406 = vunpack.c.h.b16 %v329
      %v407 = vunpack.c.l.b16 %v330
      %v408 = vunpack.c.h.b16 %v330
      %v409 = vunpack.c.l.b16 %v331
      %v410 = vunpack.c.h.b16 %v331
      %v411 = vunpack.c.l.b16 %v332
      %v412 = vunpack.c.h.b16 %v332
      %v413 = vunpack.c.l.b16 %v333
      %v414 = vunpack.c.h.b16 %v333
      %v415 = vunpack.c.l.b16 %v334
      %v416 = vunpack.c.h.b16 %v334
      %v417 = vunpack.c.l.b16 %v335
      %v418 = vunpack.c.h.b16 %v335
      %v419 = vunpack.c.l.b16 %v336
      %v420 = vunpack.c.h.b16 %v336
      %v421 = vunpack.c.l.b16 %v337
      %v422 = vunpack.c.h.b16 %v337
      %v423 = vunpack.c.l.b16 %v338
      %v424 = vunpack.c.h.b16 %v338
      %v425 = vunpack.c.l.b16 %v339
      %v426 = vunpack.c.h.b16 %v339
      %v427 = vunpack.c.l.b16 %v340
      %v428 = vunpack.c.h.b16 %v340
      %v429 = vunpack.c.l.b16 %v341
      %v430 = vunpack.c.h.b16 %v341
      %v431 = vunpack.c.l.b16 %v342
      %v432 = vunpack.c.h.b16 %v342
      %v433 = vunpack.c.l.b16 %v343
      %v434 = vunpack.c.h.b16 %v343
      %v435 = vunpack.c.l.b16 %v344
      %v436 = vunpack.c.h.b16 %v344
      %v437 = vunpack.c.l.b16 %v345
      %v438 = vunpack.c.h.b16 %v345
      %v439 = vunpack.c.l.b16 %v346
      %v440 = vunpack.c.h.b16 %v346
      %v441 = vunpack.c.l.b16 %v347
      %v442 = vunpack.c.h.b16 %v347
      %v443 = vunpack.c.l.b16 %v348
      %v444 = vunpack.c.h.b16 %v348
      %v445 = vunpack.c.l.b16 %v349
      %v446 = vunpack.c.h.b16 %v349
      %v447 = vunpack.c.l.b16 %v350
      %v448 = vunpack.c.h.b16 %v350
      %v449 = vunpack.c.l.b16 %v351
      %v450 = vunpack.c.h.b16 %v351
      %v451 = vunpack.c.l.b16 %v352
      %v452 = vunpack.c.h.b16 %v352
      %v453 = vunpack.c.l.b16 %v353
      %v454 = vunpack.c.h.b16 %v353
      %v455 = vunpack.c.l.b16 %v354
      %v456 = vunpack.c.h.b16 %v354
      %v457 = vpack.c.b16 %v397, %v393
      %v458 = vpack.c.b16 %v398, %v394
      %v459 = vpack.c.b16 %v399, %v395
      %v460 = vpack.c.b16 %v400, %v396
      %v461 = vpack.c.b16 %v405, %v401
      %v462 = vpack.c.b16 %v406, %v402
      %v463 = vpack.c.b16 %v407, %v403
      %v464 = vpack.c.b16 %v408, %v404
      %v465 = vpack.c.b16 %v413, %v409
      %v466 = vpack.c.b16 %v414, %v410
      %v467 = vpack.c.b16 %v415, %v411
      %v468 = vpack.c.b16 %v416, %v412
      %v469 = vpack.c.b16 %v421, %v417
      %v470 = vpack.c.b16 %v422, %v418
      %v471 = vpack.c.b16 %v423, %v419
      %v472 = vpack.c.b16 %v424, %v420
      %v473 = vpack.c.b16 %v429, %v425
      %v474 = vpack.c.b16 %v430, %v426
      %v475 = vpack.c.b16 %v431, %v427
      %v476 = vpack.c.b16 %v432, %v428
      %v477 = vpack.c.b16 %v437, %v433
      %v478 = vpack.c.b16 %v438, %v434
      %v479 = vpack.c.b16 %v439, %v435
      %v480 = vpack.c.b16 %v440, %v436
      %v481 = vpack.c.b16 %v445, %v441
      %v482 = vpack.c.b16 %v446, %v442
      %v483 = vpack.c.b16 %v447, %v443
      %v484 = vpack.c.b16 %v448, %v444
      %v485 = vpack.c.b16 %v453, %v449
      %v486 = vpack.c.b16 %v454, %v450
      %v487 = vpack.c.b16 %v455, %v451
      %v488 = vpack.c.b16 %v456, %v452
      %521 = vmatprep.subr.bf16.mxu0 %v458
      %522 = vmatpush1.bf16.msra.mxu0 %v457
      %523 = vmatprep.subr.bf16.mxu0 %v462
      %524 = vmatpush1.bf16.msra.mxu0 %v461
      %525 = vmatprep.subr.bf16.mxu0 %v466
      %526 = vmatpush1.bf16.msra.mxu0 %v465
      %527 = vmatprep.subr.bf16.mxu0 %v470
      %528 = vmatpush1.bf16.msra.mxu0 %v469
      %529 = vmatprep.subr.bf16.mxu0 %v474
      %530 = vmatpush1.bf16.msra.mxu0 %v473
      %531 = vmatprep.subr.bf16.mxu0 %v478
      %532 = vmatpush1.bf16.msra.mxu0 %v477
      %533 = vmatprep.subr.bf16.mxu0 %v482
      %534 = vmatpush1.bf16.msra.mxu0 %v481
      %535 = vmatprep.subr.bf16.mxu0 %v486
      %536 = vmatpush1.bf16.msra.mxu0 %v485
      %537 = vmatprep.subr.bf16.mxu0 0
      %538 = vmatpush1.bf16.msra.mxu0 0
      %539 = vmatprep.subr.bf16.mxu0 0
      %540 = vmatpush1.bf16.msra.mxu0 0
      %541 = vmatprep.subr.bf16.mxu0 0
      %542 = vmatpush1.bf16.msra.mxu0 0
      %543 = vmatprep.subr.bf16.mxu0 0
      %544 = vmatpush1.bf16.msra.mxu0 0
      %545 = vmatprep.subr.bf16.mxu0 0
      %546 = vmatpush1.bf16.msra.mxu0 0
      %547 = vmatprep.subr.bf16.mxu0 0
      %548 = vmatpush1.bf16.msra.mxu0 0
      %549 = vmatprep.subr.bf16.mxu0 0
      %550 = vmatpush1.bf16.msra.mxu0 0
      %551 = vmatprep.subr.bf16.mxu0 0
      %552 = vmatpush1.bf16.msra.mxu0 0
      %553 = vmatprep.mubr.bf16.mxu0 0
      %554 = vmatmul.mubr.bf16.gmra.mrb[0].mxu0 %v359
      %v555 = vpop.f32.mrb[0].mxu0
      %v556 = vadd.f32 0.0, %v555
      %v557 = vpop.f32.mrb[0].mxu0
      %v558 = vadd.f32 0.0, %v557
      %v559 = vpop.f32.mrb[0].mxu0
      %v560 = vadd.f32 0.0, %v559
      %v561 = vpop.f32.mrb[0].mxu0
      %v562 = vadd.f32 0.0, %v561
      %563 = vdwg.mxu0
      %564 = vmatprep.subr.bf16.mxu0 %v460
      %565 = vmatpush1.bf16.msra.mxu0 %v459
      %566 = vmatprep.subr.bf16.mxu0 %v464
      %567 = vmatpush1.bf16.msra.mxu0 %v463
      %568 = vmatprep.subr.bf16.mxu0 %v468
      %569 = vmatpush1.bf16.msra.mxu0 %v467
      %570 = vmatprep.subr.bf16.mxu0 %v472
      %571 = vmatpush1.bf16.msra.mxu0 %v471
      %572 = vmatprep.subr.bf16.mxu0 %v476
      %573 = vmatpush1.bf16.msra.mxu0 %v475
      %574 = vmatprep.subr.bf16.mxu0 %v480
      %575 = vmatpush1.bf16.msra.mxu0 %v479
      %576 = vmatprep.subr.bf16.mxu0 %v484
      %577 = vmatpush1.bf16.msra.mxu0 %v483
      %578 = vmatprep.subr.bf16.mxu0 %v488
      %579 = vmatpush1.bf16.msra.mxu0 %v487
      %580 = vmatprep.subr.bf16.mxu0 0
      %581 = vmatpush1.bf16.msra.mxu0 0
      %582 = vmatprep.subr.bf16.mxu0 0
      %583 = vmatpush1.bf16.msra.mxu0 0
      %584 = vmatprep.subr.bf16.mxu0 0
      %585 = vmatpush1.bf16.msra.mxu0 0
      %586 = vmatprep.subr.bf16.mxu0 0
      %587 = vmatpush1.bf16.msra.mxu0 0
      %588 = vmatprep.subr.bf16.mxu0 0
      %589 = vmatpush1.bf16.msra.mxu0 0
      %590 = vmatprep.subr.bf16.mxu0 0
      %591 = vmatpush1.bf16.msra.mxu0 0
      %592 = vmatprep.subr.bf16.mxu0 0
      %593 = vmatpush1.bf16.msra.mxu0 0
      %594 = vmatprep.subr.bf16.mxu0 0
      %595 = vmatpush1.bf16.msra.mxu0 0
      %596 = vmatprep.mubr.bf16.mxu0 0
      %597 = vmatmul.mubr.bf16.gmra.mrb[0].mxu0 %v359
      %v598 = vpop.f32.mrb[0].mxu0
      %v599 = vadd.f32 0.0, %v598
      %v600 = vpop.f32.mrb[0].mxu0
      %v601 = vadd.f32 0.0, %v600
      %v602 = vpop.f32.mrb[0].mxu0
      %v603 = vadd.f32 0.0, %v602
      %v604 = vpop.f32.mrb[0].mxu0
      %v605 = vadd.f32 0.0, %v604
      %606 = vdwg.mxu0
      %v607 = vadd.f32 %v313, %v556
      %v608 = vadd.f32 %v314, %v558
      %v609 = vadd.f32 %v315, %v599
      %v610 = vadd.f32 %v316, %v601
      %v611 = vadd.f32 %v317, %v560
      %v612 = vadd.f32 %v318, %v562
      %v613 = vadd.f32 %v319, %v603
      %v614 = vadd.f32 %v320, %v605
      %615 = vst [vmem:[#allocation2] sm:$0xff] %v607
      %616 = vst [vmem:[#allocation2 + $0x8] sm:$0xff] %v608
      %617 = vst [vmem:[#allocation2 + $0x10] sm:$0xff] %v609
      %618 = vst [vmem:[#allocation2 + $0x18] sm:$0xff] %v610
      %619 = vst [vmem:[#allocation2 + $0x20] sm:$0xff] %v611
      %620 = vst [vmem:[#allocation2 + $0x28] sm:$0xff] %v612
      %621 = vst [vmem:[#allocation2 + $0x30] sm:$0xff] %v613
      %622 = vst [vmem:[#allocation2 + $0x38] sm:$0xff] %v614
      // Predicated region
      $region45: #{feedforward_block.3} parent=39 // pred_check
        %p623 = pneg %p279
      $region46: #{feedforward_block.3} parent=39 // pred_check_branch
        %625 = sbr.rel (%p623) target = $region48
      $region47: #{feedforward_block.3} parent=39 // pred_region
        %v626 = vld [vmem:[#allocation2] sm:$0xff]
        %v627 = vld [vmem:[#allocation2 + $0x8] sm:$0xff]
        %v628 = vld [vmem:[#allocation2 + $0x10] sm:$0xff]
        %v629 = vld [vmem:[#allocation2 + $0x18] sm:$0xff]
        %v630 = vld [vmem:[#allocation2 + $0x20] sm:$0xff]
        %v631 = vld [vmem:[#allocation2 + $0x28] sm:$0xff]
        %v632 = vld [vmem:[#allocation2 + $0x30] sm:$0xff]
        %v633 = vld [vmem:[#allocation2 + $0x38] sm:$0xff]
        %v634 = vadd.f32 %v626, %v627
        %v635 = vadd.f32 %v634, %v628
        %v636 = vadd.f32 %v635, %v629
        %637 = vadd.xlane.f32.xlu0 %v636
        %v638 = vpop.xlane.xlu0 %637
        %v639 = vadd.f32 %v630, %v631
        %v640 = vadd.f32 %v639, %v632
        %v641 = vadd.f32 %v640, %v633
        %642 = vadd.xlane.f32.xlu0 %v641
        %v643 = vpop.xlane.xlu0 %642
        %v644 = vrcp.pop 512.0
        %v645 = vmul.f32 %v638, %v644
        %v646 = vmul.f32 %v643, %v644
        %v647 = vsub.f32 %v626, %v645
        %v648 = vsub.f32 %v627, %v645
        %v649 = vsub.f32 %v628, %v645
        %v650 = vsub.f32 %v629, %v645
        %v651 = vsub.f32 %v630, %v646
        %v652 = vsub.f32 %v631, %v646
        %v653 = vsub.f32 %v632, %v646
        %v654 = vsub.f32 %v633, %v646
        %v655 = vmul.f32 %v647, %v647
        %v656 = vmul.f32 %v648, %v648
        %v657 = vmul.f32 %v649, %v649
        %v658 = vmul.f32 %v650, %v650
        %v659 = vmul.f32 %v651, %v651
        %v660 = vmul.f32 %v652, %v652
        %v661 = vmul.f32 %v653, %v653
        %v662 = vmul.f32 %v654, %v654
        %v663 = vadd.f32 %v655, %v656
        %v664 = vadd.f32 %v663, %v657
        %v665 = vadd.f32 %v664, %v658
        %666 = vadd.xlane.f32.xlu0 %v665
        %v667 = vpop.xlane.xlu0 %666
        %v668 = vadd.f32 %v659, %v660
        %v669 = vadd.f32 %v668, %v661
        %v670 = vadd.f32 %v669, %v662
        %671 = vadd.xlane.f32.xlu0 %v670
        %v672 = vpop.xlane.xlu0 %671
        %v673 = vmul.f32 %v667, %v644
        %v674 = vmul.f32 %v672, %v644
        %v675 = vadd.f32 %v673, 1e-05
        %v676 = vadd.f32 %v674, 1e-05
        %v677 = vrsqrt.pop %v675
        %v678 = vrsqrt.pop %v676
        %v679 = vmul.f32 %v647, %v677
        %v680 = vmul.f32 %v648, %v677
        %v681 = vmul.f32 %v649, %v677
        %v682 = vmul.f32 %v650, %v677
        %v683 = vmul.f32 %v651, %v678
        %v684 = vmul.f32 %v652, %v678
        %v685 = vmul.f32 %v653, %v678
        %v686 = vmul.f32 %v654, %v678
        %v687 = vld [vmem:[%s3] sm:$0xf]
        %v689 = vlaneseq
        %v690 = vshrl.u32 %v689, 7
        %v691 = vsub.s32 0, %v690
        %v692 = vrot.slane %v687, %v691
        %v693 = vlaneseq
        %v694 = vshrl.u32 %v693, 7
        %v695 = vsub.s32 1, %v694
        %v696 = vrot.slane %v687, %v695
        %v697 = vlaneseq
        %v698 = vshrl.u32 %v697, 7
        %v699 = vsub.s32 2, %v698
        %v700 = vrot.slane %v687, %v699
        %v701 = vlaneseq
        %v702 = vshrl.u32 %v701, 7
        %v703 = vsub.s32 3, %v702
        %v704 = vrot.slane %v687, %v703
        %v709 = vmul.f32 %v679, %v692
        %v710 = vmul.f32 %v680, %v696
        %v711 = vmul.f32 %v681, %v700
        %v712 = vmul.f32 %v682, %v704
        %v713 = vmul.f32 %v683, %v692
        %v714 = vmul.f32 %v684, %v696
        %v715 = vmul.f32 %v685, %v700
        %v716 = vmul.f32 %v686, %v704
        %v717 = vld [vmem:[%s4] sm:$0xf]
        %v719 = vlaneseq
        %v720 = vshrl.u32 %v719, 7
        %v721 = vsub.s32 0, %v720
        %v722 = vrot.slane %v717, %v721
        %v723 = vlaneseq
        %v724 = vshrl.u32 %v723, 7
        %v725 = vsub.s32 1, %v724
        %v726 = vrot.slane %v717, %v725
        %v727 = vlaneseq
        %v728 = vshrl.u32 %v727, 7
        %v729 = vsub.s32 2, %v728
        %v730 = vrot.slane %v717, %v729
        %v731 = vlaneseq
        %v732 = vshrl.u32 %v731, 7
        %v733 = vsub.s32 3, %v732
        %v734 = vrot.slane %v717, %v733
        %v739 = vadd.f32 %v709, %v722
        %v740 = vadd.f32 %v710, %v726
        %v741 = vadd.f32 %v711, %v730
        %v742 = vadd.f32 %v712, %v734
        %v743 = vadd.f32 %v713, %v722
        %v744 = vadd.f32 %v714, %v726
        %v745 = vadd.f32 %v715, %v730
        %v746 = vadd.f32 %v716, %v734
        %v747 = vmax.f32 %v739, 0.0
        %v748 = vmax.f32 %v740, 0.0
        %v749 = vmax.f32 %v741, 0.0
        %v750 = vmax.f32 %v742, 0.0
        %v751 = vmax.f32 %v743, 0.0
        %v752 = vmax.f32 %v744, 0.0
        %v753 = vmax.f32 %v745, 0.0
        %v754 = vmax.f32 %v746, 0.0
        %v755 = vpack.c.bf16 %v751, %v747
        %v756 = vpack.c.bf16 %v752, %v748
        %v757 = vpack.c.bf16 %v753, %v749
        %v758 = vpack.c.bf16 %v754, %v750
        %v763 = vunpack.c.l.b16 %v755
        %v764 = vunpack.c.l.b16 %v756
        %v765 = vunpack.c.l.b16 %v757
        %v766 = vunpack.c.l.b16 %v758
        %v767 = vunpack.c.h.b16 %v755
        %v768 = vunpack.c.h.b16 %v756
        %v769 = vunpack.c.h.b16 %v757
        %v770 = vunpack.c.h.b16 %v758
        %v771 = vpack.c.b16 %v764, %v763
        %v772 = vpack.c.b16 %v766, %v765
        %v773 = vpack.c.b16 %v768, %v767
        %v774 = vpack.c.b16 %v770, %v769
        %779 = vst [vmem:[%s276] sm:$0xff] %v771
        %780 = vst [vmem:[%s276 + $0x8] sm:$0xff] %v772
        %781 = vst [vmem:[%s276 + $0x10] sm:$0xff] %v773
        %782 = vst [vmem:[%s276 + $0x18] sm:$0xff] %v774
      $region48: #{feedforward_block.3} parent=39 // pred_fallthru
        _
      %s783 = smul.u32 2, %s20
      %p784 = scmp.lt.s32.totalorder %s783, 3
      %s785 = scalar_select %p784, %s783, 3
      %s786 = smul.addr %s785, 4
      %s787 = smul.addr %s786, 4
      %s788 = scalar_lea.vmem %s5, %s787
      // Predicated region
      $region49: #{feedforward_block.3} parent=39 // pred_check
        %p789 = pneg %p163
      $region50: #{feedforward_block.3} parent=39 // pred_check_branch
        %791 = sbr.rel (%p789) target = $region52
      $region51: #{feedforward_block.3} parent=39 // pred_region
        %s792 = smul.u32 2, %s20
      $region52: #{feedforward_block.3} parent=39 // pred_fallthru
        _
    $region40: #{feedforward_block.3} parent=5 // pred_fallthru
      _
    %p793 = scmp.le.s32.totalorder 2, %s11
    // Predicated region
    $region53: #{feedforward_block.3} parent=5 // pred_check
      %p794 = pneg %p793
    $region54: #{feedforward_block.3} parent=5 // pred_check_branch
      %796 = sbr.rel (%p794) target = $region56
    $region55: #{feedforward_block.3} parent=5 // pred_region
      %s797 = ssub.s32 %s11, 2
      // Predicated region
      $region57: #{feedforward_block.3} parent=55 // pred_check
        %p798 = pneg %p169
      $region58: #{feedforward_block.3} parent=55 // pred_check_branch
        %800 = sbr.rel (%p798) target = $region60
      $region59: #{feedforward_block.3} parent=55 // pred_region
        %s801 = smul.u32 2, %s22
        %p802 = scmp.lt.s32.totalorder %s801, 3
        %s803 = scalar_select %p802, %s801, 3
        %s804 = smul.addr %s803, 4
        %s805 = smul.addr %s804, 4
        %s806 = scalar_lea.vmem %s5, %s805
      $region60: #{feedforward_block.3} parent=55 // pred_fallthru
        _
    $region56: #{feedforward_block.3} parent=5 // pred_fallthru
      _
  $region6: #{feedforward_block.3} parent=0 // loop_footer
    %s15 = sadd.s32 1, %s11
  $region7: #{feedforward_block.3} parent=0 // loop_footer_branch
    %10 = sbr.rel target = $region3
  $region8: #{feedforward_block.3} parent=0 // loop_exit
    _

// kernel: feedforward_block.5
$region0: #{feedforward_block.5}
  #allocation0 [shape = 'u32[]', space=smem, size = 0x4, offset = 0x4, fixed_abs, tag = 'smem constant byte address 0x4 - core index']
  #allocation1 [shape = 'u32[144,128]{1,0:T(1,128)}', space=vmem, size = 0x12000, scoped, tag = 'internal scratch']
  #allocation2 [shape = 'f32[16,128]{1,0:T(8,128)}', space=vmem, size = 0x2000, scoped, tag = 'scratch operand']
  %s0 = inlined_call_operand.vmem [shape: bf16[32,512], index: 0, kind: input, shape index: {}]
  %s1 = inlined_call_operand.vmem [shape: bf16[512,128], index: 1, kind: input, shape index: {}]
  %s2 = inlined_call_operand.vmem [shape: f32[1,128], index: 2, kind: input, shape index: {}]
  %s3 = inlined_call_operand.vmem [shape: f32[32,128], index: 3, kind: input, shape index: {}]
  %s4 = inlined_call_operand.vmem [shape: f32[32,128], index: 4, kind: output, shape index: {}]
  %s5 = sld [smem:[#allocation0]]
  $region57: #{feedforward_block.5} parent=0
    _
  %s7 = ssub.s32 1, %s5
  %s8 = scalar_select 0, %s7, %s5
  loop: start=0, step=1, limit=4
  $region2: #{feedforward_block.5} parent=0 // loop_pre_header
    _
  $region3: #{feedforward_block.5} parent=0 // loop_header
    %s10 = sphi 0, %s14
    %p11 = scmp.ge.s32.totalorder %s10, 4
    %s17 = sphi 0, %s29
    %s18 = sphi 0, %s25
    %s19 = sphi 0, %s17
    %s20 = sphi 0, %s18
    %s21 = sphi 0, %s19
    %s22 = sphi 0, %s20
    %s34 = sphi 0, %s36
    %s37 = sphi 0, %s34
    %s38 = sphi 0, %s37
    %s54 = sphi 0, %s38
    %s60 = sphi 0, %s62
    %s63 = sphi 0, %s60
    %s64 = sphi 0, %s63
    %s80 = sphi 0, %s64
    %s84 = sphi 0, %s84
    %s86 = sphi 0, %s84
    %s87 = sphi 0, %s86
    %s101 = sphi 0, %s87
    %s107 = sphi 0, %s109
    %s110 = sphi 0, %s107
    %s111 = sphi 0, %s110
    %s127 = sphi 0, %s111
    %s133 = sphi 0, %s135
    %s136 = sphi 0, %s133
    %s137 = sphi 0, %s136
    %s153 = sphi 0, %s137
  $region4: #{feedforward_block.5} parent=0 // loop_header_branch
    %13 = sbr.rel (%p11) target = $region8
  $region5: #{feedforward_block.5} parent=0 // loop_body
    %s15 = ssub.s32 %s10, 1
    %s16 = ssub.s32 %s10, 2
    %s23 = sadd.s32 1, %s18
    %p24 = scmp.ge.s32.totalorder %s23, 1
    %s25 = scalar_select %p24, 0, %s23
    %s26 = sadd.s32 1, %s17
    %s27 = scalar_select %p24, %s26, %s17
    %p28 = scmp.ge.s32.totalorder %s27, 2
    %s29 = scalar_select %p28, 0, %s27
    %s30 = ssub.s32 %s17, %s29
    %s31 = ssub.s32 %s18, %s25
    %s32 = sor.u32 %s30, %s31
    %p33 = scmp.eq.s32.totalorder %s32, 0
    %s35 = sadd.s32 %s34, 1
    %s36 = scalar_select %p33, %s34, %s35
    %p39 = pneg %p33
    %p40 = scmp.eq.s32.totalorder %s10, 1
    %p41 = por %p39, %p40
    %p42 = scmp.ne.s32.totalorder %s34, %s37
    %p43 = scmp.eq.s32.totalorder %s10, 0
    %p44 = por %p42, %p43
    %p45 = scmp.ne.s32.totalorder %s34, %s37
    %p46 = scmp.eq.s32.totalorder %s15, 1
    %p47 = por %p45, %p46
    %p48 = scmp.ne.s32.totalorder %s37, %s38
    %p49 = scmp.eq.s32.totalorder %s15, 0
    %p50 = por %p48, %p49
    %p51 = scmp.ne.s32.totalorder %s37, %s38
    %p52 = scmp.eq.s32.totalorder %s16, 1
    %p53 = por %p51, %p52
    %p55 = scmp.ne.s32.totalorder %s38, %s54
    %p56 = scmp.eq.s32.totalorder %s16, 0
    %p57 = por %p55, %p56
    %s58 = ssub.s32 %s18, %s25
    %p59 = scmp.eq.s32.totalorder %s58, 0
    %s61 = sadd.s32 %s60, 1
    %s62 = scalar_select %p59, %s60, %s61
    %p65 = pneg %p59
    %p66 = scmp.eq.s32.totalorder %s10, 1
    %p67 = por %p65, %p66
    %p68 = scmp.ne.s32.totalorder %s60, %s63
    %p69 = scmp.eq.s32.totalorder %s10, 0
    %p70 = por %p68, %p69
    %p71 = scmp.ne.s32.totalorder %s60, %s63
    %p72 = scmp.eq.s32.totalorder %s15, 1
    %p73 = por %p71, %p72
    %p74 = scmp.ne.s32.totalorder %s63, %s64
    %p75 = scmp.eq.s32.totalorder %s15, 0
    %p76 = por %p74, %p75
    %p77 = scmp.ne.s32.totalorder %s63, %s64
    %p78 = scmp.eq.s32.totalorder %s16, 1
    %p79 = por %p77, %p78
    %p81 = scmp.ne.s32.totalorder %s64, %s80
    %p82 = scmp.eq.s32.totalorder %s16, 0
    %p83 = por %p81, %p82
    %s85 = sadd.s32 %s84, 1
    %p88 = scmp.eq.s32.totalorder %s10, 1
    %p89 = scmp.ne.s32.totalorder %s84, %s86
    %p90 = scmp.eq.s32.totalorder %s10, 0
    %p91 = por %p89, %p90
    %p92 = scmp.ne.s32.totalorder %s84, %s86
    %p93 = scmp.eq.s32.totalorder %s15, 1
    %p94 = por %p92, %p93
    %p95 = scmp.ne.s32.totalorder %s86, %s87
    %p96 = scmp.eq.s32.totalorder %s15, 0
    %p97 = por %p95, %p96
    %p98 = scmp.ne.s32.totalorder %s86, %s87
    %p99 = scmp.eq.s32.totalorder %s16, 1
    %p100 = por %p98, %p99
    %p102 = scmp.ne.s32.totalorder %s87, %s101
    %p103 = scmp.eq.s32.totalorder %s16, 0
    %p104 = por %p102, %p103
    %s105 = ssub.s32 %s17, %s29
    %p106 = scmp.eq.s32.totalorder %s105, 0
    %s108 = sadd.s32 %s107, 1
    %s109 = scalar_select %p106, %s107, %s108
    %p112 = pneg %p106
    %p113 = scmp.eq.s32.totalorder %s10, 1
    %p114 = por %p112, %p113
    %p115 = scmp.ne.s32.totalorder %s107, %s110
    %p116 = scmp.eq.s32.totalorder %s10, 0
    %p117 = por %p115, %p116
    %p118 = scmp.ne.s32.totalorder %s107, %s110
    %p119 = scmp.eq.s32.totalorder %s15, 1
    %p120 = por %p118, %p119
    %p121 = scmp.ne.s32.totalorder %s110, %s111
    %p122 = scmp.eq.s32.totalorder %s15, 0
    %p123 = por %p121, %p122
    %p124 = scmp.ne.s32.totalorder %s110, %s111
    %p125 = scmp.eq.s32.totalorder %s16, 1
    %p126 = por %p124, %p125
    %p128 = scmp.ne.s32.totalorder %s111, %s127
    %p129 = scmp.eq.s32.totalorder %s16, 0
    %p130 = por %p128, %p129
    %s131 = ssub.s32 %s17, %s29
    %p132 = scmp.eq.s32.totalorder %s131, 0
    %s134 = sadd.s32 %s133, 1
    %s135 = scalar_select %p132, %s133, %s134
    %p138 = pneg %p132
    %p139 = scmp.eq.s32.totalorder %s10, 1
    %p140 = por %p138, %p139
    %p141 = scmp.ne.s32.totalorder %s133, %s136
    %p142 = scmp.eq.s32.totalorder %s10, 0
    %p143 = por %p141, %p142
    %p144 = scmp.ne.s32.totalorder %s133, %s136
    %p145 = scmp.eq.s32.totalorder %s15, 1
    %p146 = por %p144, %p145
    %p147 = scmp.ne.s32.totalorder %s136, %s137
    %p148 = scmp.eq.s32.totalorder %s15, 0
    %p149 = por %p147, %p148
    %p150 = scmp.ne.s32.totalorder %s136, %s137
    %p151 = scmp.eq.s32.totalorder %s16, 1
    %p152 = por %p150, %p151
    %p154 = scmp.ne.s32.totalorder %s137, %s153
    %p155 = scmp.eq.s32.totalorder %s16, 0
    %p156 = por %p154, %p155
    %p157 = scmp.le.s32.totalorder 1, %s10
    %p158 = scmp.lt.s32.totalorder %s10, 3
    %p159 = pnand %p157, %p158
    %p160 = pneg %p159
    // Predicated region
    $region9: #{feedforward_block.5} parent=5 // pred_check
      _
    $region10: #{feedforward_block.5} parent=5 // pred_check_branch
      %162 = sbr.rel (%p159) target = $region12
    $region11: #{feedforward_block.5} parent=5 // pred_region
      %s163 = ssub.s32 %s10, 1
      // Predicated region
      $region13: #{feedforward_block.5} parent=11 // pred_check
        %p164 = pneg %p76
      $region14: #{feedforward_block.5} parent=11 // pred_check_branch
        %166 = sbr.rel (%p164) target = $region16
      $region15: #{feedforward_block.5} parent=11 // pred_region
        %s167 = smul.u32 64, %s20
        %p168 = scmp.lt.s32.totalorder %s167, 63
        %s169 = scalar_select %p168, %s167, 63
        %s170 = smul.addr %s169, 4
        %s171 = scalar_lea.vmem %s1, %s170
        %s172 = smul.u32 64, %s20
      $region16: #{feedforward_block.5} parent=11 // pred_fallthru
        _
      // Predicated region
      $region17: #{feedforward_block.5} parent=11 // pred_check
        %p173 = pneg %p97
      $region18: #{feedforward_block.5} parent=11 // pred_check_branch
        %175 = sbr.rel (%p173) target = $region20
      $region19: #{feedforward_block.5} parent=11 // pred_region
        _
      $region20: #{feedforward_block.5} parent=11 // pred_fallthru
        _
      // Predicated region
      $region21: #{feedforward_block.5} parent=11 // pred_check
        %p176 = pneg %p123
      $region22: #{feedforward_block.5} parent=11 // pred_check_branch
        %178 = sbr.rel (%p176) target = $region24
      $region23: #{feedforward_block.5} parent=11 // pred_region
        %s179 = smul.u32 2, %s19
        %p180 = scmp.lt.s32.totalorder %s179, 3
        %s181 = scalar_select %p180, %s179, 3
        %s182 = smul.addr %s181, 8
        %s183 = scalar_lea.vmem %s3, %s182
        %s184 = smul.u32 2, %s19
      $region24: #{feedforward_block.5} parent=11 // pred_fallthru
        _
    $region12: #{feedforward_block.5} parent=5 // pred_fallthru
      _
    %p185 = scmp.lt.s32.totalorder %s10, 2
    // Predicated region
    $region25: #{feedforward_block.5} parent=5 // pred_check
      %p186 = pneg %p185
    $region26: #{feedforward_block.5} parent=5 // pred_check_branch
      %188 = sbr.rel (%p186) target = $region28
    $region27: #{feedforward_block.5} parent=5 // pred_region
      // Predicated region
      $region29: #{feedforward_block.5} parent=27 // pred_check
        %p189 = pneg %p44
      $region30: #{feedforward_block.5} parent=27 // pred_check_branch
        %191 = sbr.rel (%p189) target = $region32
      $region31: #{feedforward_block.5} parent=27 // pred_region
        %s192 = smul.u32 2, %s17
        %s193 = smul.u32 4, %s18
        %p194 = scmp.lt.s32.totalorder %s192, 3
        %s195 = scalar_select %p194, %s192, 3
        %p196 = scmp.lt.s32.totalorder %s193, 3
        %s197 = scalar_select %p196, %s193, 3
        %s198 = smul.addr %s195, 4
        %s199 = sadd.s32 %s197, %s198
        %s200 = smul.addr %s199, 4
        %s201 = scalar_lea.vmem %s0, %s200
        %s202 = smul.u32 2, %s17
        %s203 = smul.u32 4, %s18
      $region32: #{feedforward_block.5} parent=27 // pred_fallthru
        _
    $region28: #{feedforward_block.5} parent=5 // pred_fallthru
      _
    %p204 = scmp.le.s32.totalorder 1, %s10
    %p205 = scmp.lt.s32.totalorder %s10, 3
    %p206 = pnand %p204, %p205
    %p207 = pneg %p206
    // Predicated region
    $region33: #{feedforward_block.5} parent=5 // pred_check
      _
    $region34: #{feedforward_block.5} parent=5 // pred_check_branch
      %209 = sbr.rel (%p206) target = $region36
    $region35: #{feedforward_block.5} parent=5 // pred_region
      %s210 = ssub.s32 %s10, 1
      %s211 = smul.u32 2, %s19
      %s212 = smul.u32 4, %s20
      %p213 = scmp.lt.s32.totalorder %s211, 3
      %s214 = scalar_select %p213, %s211, 3
      %p215 = scmp.lt.s32.totalorder %s212, 3
      %s216 = scalar_select %p215, %s212, 3
      %s217 = smul.addr %s214, 4
      %s218 = sadd.s32 %s216, %s217
      %s219 = smul.addr %s218, 4
      %s220 = scalar_lea.vmem %s0, %s219
      %p221 = pneg %p50
      %p222 = pneg %p47
      %s223 = smul.u32 64, %s20
      %p224 = scmp.lt.s32.totalorder %s223, 63
      %s225 = scalar_select %p224, %s223, 63
      %s226 = smul.addr %s225, 4
      %s227 = scalar_lea.vmem %s1, %s226
      %p228 = pneg %p76
      %p229 = pneg %p73
      %p230 = pneg %p97
      %p231 = pneg %p94
      %s232 = smul.u32 2, %s19
      %p233 = scmp.lt.s32.totalorder %s232, 3
      %s234 = scalar_select %p233, %s232, 3
      %s235 = smul.addr %s234, 8
      %s236 = scalar_lea.vmem %s3, %s235
      %p237 = pneg %p123
      %p238 = pneg %p120
      %p239 = pneg %p149
      %p240 = pneg %p146
      %s241 = smul.u32 2, %s19
      %p242 = scmp.lt.s32.totalorder %s241, 3
      %s243 = scalar_select %p242, %s241, 3
      %s244 = smul.addr %s243, 8
      %s245 = scalar_lea.vmem %s4, %s244
      %s246 = smul.u32 2, %s19
      %s247 = smul.u32 4, %s20
      %p248 = scmp.lt.s32.totalorder %s246, 3
      %s249 = scalar_select %p248, %s246, 3
      %p250 = scmp.lt.s32.totalorder %s247, 3
      %s251 = scalar_select %p250, %s247, 3
      %s252 = smul.addr %s249, 4
      %s253 = sadd.s32 %s251, %s252
      %s254 = smul.addr %s253, 4
      %s255 = scalar_lea.vmem %s0, %s254
      %s256 = smul.u32 2, %s19
      %s257 = smul.u32 4, %s20
      %s258 = smul.u32 64, %s20
      %p259 = scmp.lt.s32.totalorder %s258, 63
      %s260 = scalar_select %p259, %s258, 63
      %s261 = smul.addr %s260, 4
      %s262 = scalar_lea.vmem %s1, %s261
      %s263 = smul.u32 64, %s20
      %s264 = smul.u32 2, %s19
      %p265 = scmp.lt.s32.totalorder %s264, 3
      %s266 = scalar_select %p265, %s264, 3
      %s267 = smul.addr %s266, 8
      %s268 = scalar_lea.vmem %s3, %s267
      %s269 = smul.u32 2, %s19
      %s270 = smul.u32 2, %s19
      %p271 = scmp.lt.s32.totalorder %s270, 3
      %s272 = scalar_select %p271, %s270, 3
      %s273 = smul.addr %s272, 8
      %s274 = scalar_lea.vmem %s4, %s273
      %s275 = smul.u32 2, %s19
      %p277 = scmp.eq.s32.totalorder %s20, 0
      // Predicated region
      $region37: #{feedforward_block.5} parent=35 // pred_check
        %p278 = pneg %p277
      $region38: #{feedforward_block.5} parent=35 // pred_check_branch
        %280 = sbr.rel (%p278) target = $region40
      $region39: #{feedforward_block.5} parent=35 // pred_region
        %v281 = vld [vmem:[%s2] sm:$0x1]
        %v283 = vlaneseq
        %v284 = vshrl.u32 %v283, 7
        %v285 = vsub.s32 0, %v284
        %v286 = vrot.slane %v281, %v285
        %288 = vst [vmem:[#allocation2] sm:$0xff] %v286
        %289 = vst [vmem:[#allocation2 + $0x8] sm:$0xff] %v286
      $region40: #{feedforward_block.5} parent=35 // pred_fallthru
        _
      %v290 = vld [vmem:[#allocation2] sm:$0xff]
      %v291 = vld [vmem:[#allocation2 + $0x8] sm:$0xff]
      %v292 = vld [vmem:[%s255] sm:$0xff]
      %v293 = vld [vmem:[%s255 + $0x8] sm:$0xff]
      %v294 = vld [vmem:[%s255 + $0x10] sm:$0xff]
      %v295 = vld [vmem:[%s255 + $0x18] sm:$0xff]
      %v296 = vld [vmem:[%s262] sm:$0xf]
      %v297 = vld [vmem:[%s262 + $0x4] sm:$0xf]
      %v298 = vld [vmem:[%s262 + $0x8] sm:$0xf]
      %v299 = vld [vmem:[%s262 + $0xc] sm:$0xf]
      %v300 = vld [vmem:[%s262 + $0x10] sm:$0xf]
      %v301 = vld [vmem:[%s262 + $0x14] sm:$0xf]
      %v302 = vld [vmem:[%s262 + $0x18] sm:$0xf]
      %v303 = vld [vmem:[%s262 + $0x1c] sm:$0xf]
      %v304 = vld [vmem:[%s262 + $0x20] sm:$0xf]
      %v305 = vld [vmem:[%s262 + $0x24] sm:$0xf]
      %v306 = vld [vmem:[%s262 + $0x28] sm:$0xf]
      %v307 = vld [vmem:[%s262 + $0x2c] sm:$0xf]
      %v308 = vld [vmem:[%s262 + $0x30] sm:$0xf]
      %v309 = vld [vmem:[%s262 + $0x34] sm:$0xf]
      %v310 = vld [vmem:[%s262 + $0x38] sm:$0xf]
      %v311 = vld [vmem:[%s262 + $0x3c] sm:$0xf]
      %v312 = vld [vmem:[%s262 + $0x40] sm:$0xf]
      %v313 = vld [vmem:[%s262 + $0x44] sm:$0xf]
      %v314 = vld [vmem:[%s262 + $0x48] sm:$0xf]
      %v315 = vld [vmem:[%s262 + $0x4c] sm:$0xf]
      %v316 = vld [vmem:[%s262 + $0x50] sm:$0xf]
      %v317 = vld [vmem:[%s262 + $0x54] sm:$0xf]
      %v318 = vld [vmem:[%s262 + $0x58] sm:$0xf]
      %v319 = vld [vmem:[%s262 + $0x5c] sm:$0xf]
      %v320 = vld [vmem:[%s262 + $0x60] sm:$0xf]
      %v321 = vld [vmem:[%s262 + $0x64] sm:$0xf]
      %v322 = vld [vmem:[%s262 + $0x68] sm:$0xf]
      %v323 = vld [vmem:[%s262 + $0x6c] sm:$0xf]
      %v324 = vld [vmem:[%s262 + $0x70] sm:$0xf]
      %v325 = vld [vmem:[%s262 + $0x74] sm:$0xf]
      %v326 = vld [vmem:[%s262 + $0x78] sm:$0xf]
      %v327 = vld [vmem:[%s262 + $0x7c] sm:$0xf]
      %v328 = vld [vmem:[%s262 + $0x80] sm:$0xf]
      %v329 = vld [vmem:[%s262 + $0x84] sm:$0xf]
      %v330 = vld [vmem:[%s262 + $0x88] sm:$0xf]
      %v331 = vld [vmem:[%s262 + $0x8c] sm:$0xf]
      %v332 = vld [vmem:[%s262 + $0x90] sm:$0xf]
      %v333 = vld [vmem:[%s262 + $0x94] sm:$0xf]
      %v334 = vld [vmem:[%s262 + $0x98] sm:$0xf]
      %v335 = vld [vmem:[%s262 + $0x9c] sm:$0xf]
      %v336 = vld [vmem:[%s262 + $0xa0] sm:$0xf]
      %v337 = vld [vmem:[%s262 + $0xa4] sm:$0xf]
      %v338 = vld [vmem:[%s262 + $0xa8] sm:$0xf]
      %v339 = vld [vmem:[%s262 + $0xac] sm:$0xf]
      %v340 = vld [vmem:[%s262 + $0xb0] sm:$0xf]
      %v341 = vld [vmem:[%s262 + $0xb4] sm:$0xf]
      %v342 = vld [vmem:[%s262 + $0xb8] sm:$0xf]
      %v343 = vld [vmem:[%s262 + $0xbc] sm:$0xf]
      %v344 = vld [vmem:[%s262 + $0xc0] sm:$0xf]
      %v345 = vld [vmem:[%s262 + $0xc4] sm:$0xf]
      %v346 = vld [vmem:[%s262 + $0xc8] sm:$0xf]
      %v347 = vld [vmem:[%s262 + $0xcc] sm:$0xf]
      %v348 = vld [vmem:[%s262 + $0xd0] sm:$0xf]
      %v349 = vld [vmem:[%s262 + $0xd4] sm:$0xf]
      %v350 = vld [vmem:[%s262 + $0xd8] sm:$0xf]
      %v351 = vld [vmem:[%s262 + $0xdc] sm:$0xf]
      %v352 = vld [vmem:[%s262 + $0xe0] sm:$0xf]
      %v353 = vld [vmem:[%s262 + $0xe4] sm:$0xf]
      %v354 = vld [vmem:[%s262 + $0xe8] sm:$0xf]
      %v355 = vld [vmem:[%s262 + $0xec] sm:$0xf]
      %v356 = vld [vmem:[%s262 + $0xf0] sm:$0xf]
      %v357 = vld [vmem:[%s262 + $0xf4] sm:$0xf]
      %v358 = vld [vmem:[%s262 + $0xf8] sm:$0xf]
      %v359 = vld [vmem:[%s262 + $0xfc] sm:$0xf]
      %v364 = vunpack.c.l.b16 %v292
      %v365 = vunpack.c.h.b16 %v292
      %v366 = vunpack.c.l.b16 %v293
      %v367 = vunpack.c.h.b16 %v293
      %v368 = vunpack.c.l.b16 %v294
      %v369 = vunpack.c.h.b16 %v294
      %v370 = vunpack.c.l.b16 %v295
      %v371 = vunpack.c.h.b16 %v295
      %v372 = vpack.c.b16 %v368, %v364
      %v373 = vpack.c.b16 %v369, %v365
      %v374 = vpack.c.b16 %v370, %v366
      %v375 = vpack.c.b16 %v371, %v367
      %v444 = vunpack.c.l.b16 %v296
      %v445 = vunpack.c.l.b16 %v297
      %v446 = vunpack.c.l.b16 %v298
      %v447 = vunpack.c.l.b16 %v299
      %v448 = vunpack.c.l.b16 %v300
      %v449 = vunpack.c.l.b16 %v301
      %v450 = vunpack.c.l.b16 %v302
      %v451 = vunpack.c.l.b16 %v303
      %v452 = vunpack.c.l.b16 %v304
      %v453 = vunpack.c.l.b16 %v305
      %v454 = vunpack.c.l.b16 %v306
      %v455 = vunpack.c.l.b16 %v307
      %v456 = vunpack.c.l.b16 %v308
      %v457 = vunpack.c.l.b16 %v309
      %v458 = vunpack.c.l.b16 %v310
      %v459 = vunpack.c.l.b16 %v311
      %v460 = vunpack.c.l.b16 %v312
      %v461 = vunpack.c.l.b16 %v313
      %v462 = vunpack.c.l.b16 %v314
      %v463 = vunpack.c.l.b16 %v315
      %v464 = vunpack.c.l.b16 %v316
      %v465 = vunpack.c.l.b16 %v317
      %v466 = vunpack.c.l.b16 %v318
      %v467 = vunpack.c.l.b16 %v319
      %v468 = vunpack.c.l.b16 %v320
      %v469 = vunpack.c.l.b16 %v321
      %v470 = vunpack.c.l.b16 %v322
      %v471 = vunpack.c.l.b16 %v323
      %v472 = vunpack.c.l.b16 %v324
      %v473 = vunpack.c.l.b16 %v325
      %v474 = vunpack.c.l.b16 %v326
      %v475 = vunpack.c.l.b16 %v327
      %v476 = vunpack.c.l.b16 %v328
      %v477 = vunpack.c.l.b16 %v329
      %v478 = vunpack.c.l.b16 %v330
      %v479 = vunpack.c.l.b16 %v331
      %v480 = vunpack.c.l.b16 %v332
      %v481 = vunpack.c.l.b16 %v333
      %v482 = vunpack.c.l.b16 %v334
      %v483 = vunpack.c.l.b16 %v335
      %v484 = vunpack.c.l.b16 %v336
      %v485 = vunpack.c.l.b16 %v337
      %v486 = vunpack.c.l.b16 %v338
      %v487 = vunpack.c.l.b16 %v339
      %v488 = vunpack.c.l.b16 %v340
      %v489 = vunpack.c.l.b16 %v341
      %v490 = vunpack.c.l.b16 %v342
      %v491 = vunpack.c.l.b16 %v343
      %v492 = vunpack.c.l.b16 %v344
      %v493 = vunpack.c.l.b16 %v345
      %v494 = vunpack.c.l.b16 %v346
      %v495 = vunpack.c.l.b16 %v347
      %v496 = vunpack.c.l.b16 %v348
      %v497 = vunpack.c.l.b16 %v349
      %v498 = vunpack.c.l.b16 %v350
      %v499 = vunpack.c.l.b16 %v351
      %v500 = vunpack.c.l.b16 %v352
      %v501 = vunpack.c.l.b16 %v353
      %v502 = vunpack.c.l.b16 %v354
      %v503 = vunpack.c.l.b16 %v355
      %v504 = vunpack.c.l.b16 %v356
      %v505 = vunpack.c.l.b16 %v357
      %v506 = vunpack.c.l.b16 %v358
      %v507 = vunpack.c.l.b16 %v359
      %v508 = vpack.c.b16 %v445, %v444
      %v509 = vpack.c.b16 %v447, %v446
      %v510 = vpack.c.b16 %v449, %v448
      %v511 = vpack.c.b16 %v451, %v450
      %v512 = vpack.c.b16 %v453, %v452
      %v513 = vpack.c.b16 %v455, %v454
      %v514 = vpack.c.b16 %v457, %v456
      %v515 = vpack.c.b16 %v459, %v458
      %v516 = vpack.c.b16 %v461, %v460
      %v517 = vpack.c.b16 %v463, %v462
      %v518 = vpack.c.b16 %v465, %v464
      %v519 = vpack.c.b16 %v467, %v466
      %v520 = vpack.c.b16 %v469, %v468
      %v521 = vpack.c.b16 %v471, %v470
      %v522 = vpack.c.b16 %v473, %v472
      %v523 = vpack.c.b16 %v475, %v474
      %v524 = vpack.c.b16 %v477, %v476
      %v525 = vpack.c.b16 %v479, %v478
      %v526 = vpack.c.b16 %v481, %v480
      %v527 = vpack.c.b16 %v483, %v482
      %v528 = vpack.c.b16 %v485, %v484
      %v529 = vpack.c.b16 %v487, %v486
      %v530 = vpack.c.b16 %v489, %v488
      %v531 = vpack.c.b16 %v491, %v490
      %v532 = vpack.c.b16 %v493, %v492
      %v533 = vpack.c.b16 %v495, %v494
      %v534 = vpack.c.b16 %v497, %v496
      %v535 = vpack.c.b16 %v499, %v498
      %v536 = vpack.c.b16 %v501, %v500
      %v537 = vpack.c.b16 %v503, %v502
      %v538 = vpack.c.b16 %v505, %v504
      %v539 = vpack.c.b16 %v507, %v506
      %572 = vmatprep.subr.bf16.mxu0 0
      %573 = vmatpush1.bf16.msra.mxu0 %v508
      %574 = vmatprep.subr.bf16.mxu0 0
      %575 = vmatpush1.bf16.msra.mxu0 %v509
      %576 = vmatprep.subr.bf16.mxu0 0
      %577 = vmatpush1.bf16.msra.mxu0 %v510
      %578 = vmatprep.subr.bf16.mxu0 0
      %579 = vmatpush1.bf16.msra.mxu0 %v511
      %580 = vmatprep.subr.bf16.mxu0 0
      %581 = vmatpush1.bf16.msra.mxu0 %v512
      %582 = vmatprep.subr.bf16.mxu0 0
      %583 = vmatpush1.bf16.msra.mxu0 %v513
      %584 = vmatprep.subr.bf16.mxu0 0
      %585 = vmatpush1.bf16.msra.mxu0 %v514
      %586 = vmatprep.subr.bf16.mxu0 0
      %587 = vmatpush1.bf16.msra.mxu0 %v515
      %588 = vmatprep.subr.bf16.mxu0 0
      %589 = vmatpush1.bf16.msra.mxu0 %v516
      %590 = vmatprep.subr.bf16.mxu0 0
      %591 = vmatpush1.bf16.msra.mxu0 %v517
      %592 = vmatprep.subr.bf16.mxu0 0
      %593 = vmatpush1.bf16.msra.mxu0 %v518
      %594 = vmatprep.subr.bf16.mxu0 0
      %595 = vmatpush1.bf16.msra.mxu0 %v519
      %596 = vmatprep.subr.bf16.mxu0 0
      %597 = vmatpush1.bf16.msra.mxu0 %v520
      %598 = vmatprep.subr.bf16.mxu0 0
      %599 = vmatpush1.bf16.msra.mxu0 %v521
      %600 = vmatprep.subr.bf16.mxu0 0
      %601 = vmatpush1.bf16.msra.mxu0 %v522
      %602 = vmatprep.subr.bf16.mxu0 0
      %603 = vmatpush1.bf16.msra.mxu0 %v523
      %604 = vmatprep.mubr.bf16.mxu0 %v373
      %605 = vmatmul.mubr.bf16.gmra.mrb[0].mxu0 %v372
      %v606 = vpop.f32.mrb[0].mxu0
      %v607 = vadd.f32 0.0, %v606
      %v608 = vpop.f32.mrb[0].mxu0
      %v609 = vpop.f32.mrb[0].mxu0
      %v610 = vadd.f32 0.0, %v609
      %v611 = vpop.f32.mrb[0].mxu0
      %612 = vdwg.mxu0
      %613 = vmatprep.subr.bf16.mxu0 0
      %614 = vmatpush1.bf16.msra.mxu0 %v524
      %615 = vmatprep.subr.bf16.mxu0 0
      %616 = vmatpush1.bf16.msra.mxu0 %v525
      %617 = vmatprep.subr.bf16.mxu0 0
      %618 = vmatpush1.bf16.msra.mxu0 %v526
      %619 = vmatprep.subr.bf16.mxu0 0
      %620 = vmatpush1.bf16.msra.mxu0 %v527
      %621 = vmatprep.subr.bf16.mxu0 0
      %622 = vmatpush1.bf16.msra.mxu0 %v528
      %623 = vmatprep.subr.bf16.mxu0 0
      %624 = vmatpush1.bf16.msra.mxu0 %v529
      %625 = vmatprep.subr.bf16.mxu0 0
      %626 = vmatpush1.bf16.msra.mxu0 %v530
      %627 = vmatprep.subr.bf16.mxu0 0
      %628 = vmatpush1.bf16.msra.mxu0 %v531
      %629 = vmatprep.subr.bf16.mxu0 0
      %630 = vmatpush1.bf16.msra.mxu0 %v532
      %631 = vmatprep.subr.bf16.mxu0 0
      %632 = vmatpush1.bf16.msra.mxu0 %v533
      %633 = vmatprep.subr.bf16.mxu0 0
      %634 = vmatpush1.bf16.msra.mxu0 %v534
      %635 = vmatprep.subr.bf16.mxu0 0
      %636 = vmatpush1.bf16.msra.mxu0 %v535
      %637 = vmatprep.subr.bf16.mxu0 0
      %638 = vmatpush1.bf16.msra.mxu0 %v536
      %639 = vmatprep.subr.bf16.mxu0 0
      %640 = vmatpush1.bf16.msra.mxu0 %v537
      %641 = vmatprep.subr.bf16.mxu0 0
      %642 = vmatpush1.bf16.msra.mxu0 %v538
      %643 = vmatprep.subr.bf16.mxu0 0
      %644 = vmatpush1.bf16.msra.mxu0 %v539
      %645 = vmatprep.mubr.bf16.mxu0 %v375
      %646 = vmatmul.mubr.bf16.gmra.mrb[0].mxu0 %v374
      %v647 = vpop.f32.mrb[0].mxu0
      %v648 = vadd.f32 %v607, %v647
      %v649 = vpop.f32.mrb[0].mxu0
      %v650 = vpop.f32.mrb[0].mxu0
      %v651 = vadd.f32 %v610, %v650
      %v652 = vpop.f32.mrb[0].mxu0
      %653 = vdwg.mxu0
      %v654 = vadd.f32 %v290, %v648
      %v655 = vadd.f32 %v291, %v651
      %656 = vst [vmem:[#allocation2] sm:$0xff] %v654
      %657 = vst [vmem:[#allocation2 + $0x8] sm:$0xff] %v655
      // Predicated region
      $region41: #{feedforward_block.5} parent=35 // pred_check
        %p658 = pneg %p277
      $region42: #{feedforward_block.5} parent=35 // pred_check_branch
        %660 = sbr.rel (%p658) target = $region44
      $region43: #{feedforward_block.5} parent=35 // pred_region
        %v661 = vld [vmem:[#allocation2] sm:$0xff]
        %v662 = vld [vmem:[#allocation2 + $0x8] sm:$0xff]
        %v663 = vld [vmem:[%s268] sm:$0xff]
        %v664 = vld [vmem:[%s268 + $0x8] sm:$0xff]
        %v665 = vadd.f32 %v661, %v663
        %v666 = vadd.f32 %v662, %v664
        %667 = vst [vmem:[%s274] sm:$0xff] %v665
        %668 = vst [vmem:[%s274 + $0x8] sm:$0xff] %v666
      $region44: #{feedforward_block.5} parent=35 // pred_fallthru
        _
      %s669 = smul.u32 2, %s19
      %p670 = scmp.lt.s32.totalorder %s669, 3
      %s671 = scalar_select %p670, %s669, 3
      %s672 = smul.addr %s671, 8
      %s673 = scalar_lea.vmem %s4, %s672
      // Predicated region
      $region45: #{feedforward_block.5} parent=35 // pred_check
        %p674 = pneg %p146
      $region46: #{feedforward_block.5} parent=35 // pred_check_branch
        %676 = sbr.rel (%p674) target = $region48
      $region47: #{feedforward_block.5} parent=35 // pred_region
        %s677 = smul.u32 2, %s19
      $region48: #{feedforward_block.5} parent=35 // pred_fallthru
        _
    $region36: #{feedforward_block.5} parent=5 // pred_fallthru
      _
    %p678 = scmp.le.s32.totalorder 2, %s10
    // Predicated region
    $region49: #{feedforward_block.5} parent=5 // pred_check
      %p679 = pneg %p678
    $region50: #{feedforward_block.5} parent=5 // pred_check_branch
      %681 = sbr.rel (%p679) target = $region52
    $region51: #{feedforward_block.5} parent=5 // pred_region
      %s682 = ssub.s32 %s10, 2
      // Predicated region
      $region53: #{feedforward_block.5} parent=51 // pred_check
        %p683 = pneg %p152
      $region54: #{feedforward_block.5} parent=51 // pred_check_branch
        %685 = sbr.rel (%p683) target = $region56
      $region55: #{feedforward_block.5} parent=51 // pred_region
        %s686 = smul.u32 2, %s21
        %p687 = scmp.lt.s32.totalorder %s686, 3
        %s688 = scalar_select %p687, %s686, 3
        %s689 = smul.addr %s688, 8
        %s690 = scalar_lea.vmem %s4, %s689
      $region56: #{feedforward_block.5} parent=51 // pred_fallthru
        _
    $region52: #{feedforward_block.5} parent=5 // pred_fallthru
      _
  $region6: #{feedforward_block.5} parent=0 // loop_footer
    %s14 = sadd.s32 1, %s10
  $region7: #{feedforward_block.5} parent=0 // loop_footer_branch
    %9 = sbr.rel target = $region3
  $region8: #{feedforward_block.5} parent=0 // loop_exit
    _

// kernel: feedforward_block.4
$region0: #{feedforward_block.4}
  #allocation0 [shape = 'u32[]', space=smem, size = 0x4, offset = 0x4, fixed_abs, tag = 'smem constant byte address 0x4 - core index']
  #allocation1 [shape = 'u32[144,128]{1,0:T(1,128)}', space=vmem, size = 0x12000, scoped, tag = 'internal scratch']
  #allocation2 [shape = 'f32[16,512]{1,0:T(8,128)}', space=vmem, size = 0x8000, scoped, tag = 'scratch operand']
  %s0 = inlined_call_operand.vmem [shape: bf16[32,512], index: 0, kind: input, shape index: {}]
  %s1 = inlined_call_operand.vmem [shape: bf16[512,512], index: 1, kind: input, shape index: {}]
  %s2 = inlined_call_operand.vmem [shape: f32[1,512], index: 2, kind: input, shape index: {}]
  %s3 = inlined_call_operand.vmem [shape: f32[1,512], index: 3, kind: input, shape index: {}]
  %s4 = inlined_call_operand.vmem [shape: f32[1,512], index: 4, kind: input, shape index: {}]
  %s5 = inlined_call_operand.vmem [shape: bf16[32,512], index: 5, kind: output, shape index: {}]
  %s6 = sld [smem:[#allocation0]]
  $region61: #{feedforward_block.4} parent=0
    _
  %s8 = ssub.s32 1, %s6
  %s9 = scalar_select 0, %s8, %s6
  loop: start=0, step=1, limit=4
  $region2: #{feedforward_block.4} parent=0 // loop_pre_header
    _
  $region3: #{feedforward_block.4} parent=0 // loop_header
    %s11 = sphi 0, %s15
    %p12 = scmp.ge.s32.totalorder %s11, 4
    %s18 = sphi 0, %s30
    %s19 = sphi 0, %s26
    %s20 = sphi 0, %s18
    %s21 = sphi 0, %s19
    %s22 = sphi 0, %s20
    %s23 = sphi 0, %s21
    %s35 = sphi 0, %s37
    %s38 = sphi 0, %s35
    %s39 = sphi 0, %s38
    %s55 = sphi 0, %s39
    %s61 = sphi 0, %s63
    %s64 = sphi 0, %s61
    %s65 = sphi 0, %s64
    %s81 = sphi 0, %s65
    %s85 = sphi 0, %s85
    %s87 = sphi 0, %s85
    %s88 = sphi 0, %s87
    %s102 = sphi 0, %s88
    %s106 = sphi 0, %s106
    %s108 = sphi 0, %s106
    %s109 = sphi 0, %s108
    %s123 = sphi 0, %s109
    %s127 = sphi 0, %s127
    %s129 = sphi 0, %s127
    %s130 = sphi 0, %s129
    %s144 = sphi 0, %s130
    %s150 = sphi 0, %s152
    %s153 = sphi 0, %s150
    %s154 = sphi 0, %s153
    %s170 = sphi 0, %s154
  $region4: #{feedforward_block.4} parent=0 // loop_header_branch
    %14 = sbr.rel (%p12) target = $region8
  $region5: #{feedforward_block.4} parent=0 // loop_body
    %s16 = ssub.s32 %s11, 1
    %s17 = ssub.s32 %s11, 2
    %s24 = sadd.s32 1, %s19
    %p25 = scmp.ge.s32.totalorder %s24, 1
    %s26 = scalar_select %p25, 0, %s24
    %s27 = sadd.s32 1, %s18
    %s28 = scalar_select %p25, %s27, %s18
    %p29 = scmp.ge.s32.totalorder %s28, 2
    %s30 = scalar_select %p29, 0, %s28
    %s31 = ssub.s32 %s18, %s30
    %s32 = ssub.s32 %s19, %s26
    %s33 = sor.u32 %s31, %s32
    %p34 = scmp.eq.s32.totalorder %s33, 0
    %s36 = sadd.s32 %s35, 1
    %s37 = scalar_select %p34, %s35, %s36
    %p40 = pneg %p34
    %p41 = scmp.eq.s32.totalorder %s11, 1
    %p42 = por %p40, %p41
    %p43 = scmp.ne.s32.totalorder %s35, %s38
    %p44 = scmp.eq.s32.totalorder %s11, 0
    %p45 = por %p43, %p44
    %p46 = scmp.ne.s32.totalorder %s35, %s38
    %p47 = scmp.eq.s32.totalorder %s16, 1
    %p48 = por %p46, %p47
    %p49 = scmp.ne.s32.totalorder %s38, %s39
    %p50 = scmp.eq.s32.totalorder %s16, 0
    %p51 = por %p49, %p50
    %p52 = scmp.ne.s32.totalorder %s38, %s39
    %p53 = scmp.eq.s32.totalorder %s17, 1
    %p54 = por %p52, %p53
    %p56 = scmp.ne.s32.totalorder %s39, %s55
    %p57 = scmp.eq.s32.totalorder %s17, 0
    %p58 = por %p56, %p57
    %s59 = ssub.s32 %s19, %s26
    %p60 = scmp.eq.s32.totalorder %s59, 0
    %s62 = sadd.s32 %s61, 1
    %s63 = scalar_select %p60, %s61, %s62
    %p66 = pneg %p60
    %p67 = scmp.eq.s32.totalorder %s11, 1
    %p68 = por %p66, %p67
    %p69 = scmp.ne.s32.totalorder %s61, %s64
    %p70 = scmp.eq.s32.totalorder %s11, 0
    %p71 = por %p69, %p70
    %p72 = scmp.ne.s32.totalorder %s61, %s64
    %p73 = scmp.eq.s32.totalorder %s16, 1
    %p74 = por %p72, %p73
    %p75 = scmp.ne.s32.totalorder %s64, %s65
    %p76 = scmp.eq.s32.totalorder %s16, 0
    %p77 = por %p75, %p76
    %p78 = scmp.ne.s32.totalorder %s64, %s65
    %p79 = scmp.eq.s32.totalorder %s17, 1
    %p80 = por %p78, %p79
    %p82 = scmp.ne.s32.totalorder %s65, %s81
    %p83 = scmp.eq.s32.totalorder %s17, 0
    %p84 = por %p82, %p83
    %s86 = sadd.s32 %s85, 1
    %p89 = scmp.eq.s32.totalorder %s11, 1
    %p90 = scmp.ne.s32.totalorder %s85, %s87
    %p91 = scmp.eq.s32.totalorder %s11, 0
    %p92 = por %p90, %p91
    %p93 = scmp.ne.s32.totalorder %s85, %s87
    %p94 = scmp.eq.s32.totalorder %s16, 1
    %p95 = por %p93, %p94
    %p96 = scmp.ne.s32.totalorder %s87, %s88
    %p97 = scmp.eq.s32.totalorder %s16, 0
    %p98 = por %p96, %p97
    %p99 = scmp.ne.s32.totalorder %s87, %s88
    %p100 = scmp.eq.s32.totalorder %s17, 1
    %p101 = por %p99, %p100
    %p103 = scmp.ne.s32.totalorder %s88, %s102
    %p104 = scmp.eq.s32.totalorder %s17, 0
    %p105 = por %p103, %p104
    %s107 = sadd.s32 %s106, 1
    %p110 = scmp.eq.s32.totalorder %s11, 1
    %p111 = scmp.ne.s32.totalorder %s106, %s108
    %p112 = scmp.eq.s32.totalorder %s11, 0
    %p113 = por %p111, %p112
    %p114 = scmp.ne.s32.totalorder %s106, %s108
    %p115 = scmp.eq.s32.totalorder %s16, 1
    %p116 = por %p114, %p115
    %p117 = scmp.ne.s32.totalorder %s108, %s109
    %p118 = scmp.eq.s32.totalorder %s16, 0
    %p119 = por %p117, %p118
    %p120 = scmp.ne.s32.totalorder %s108, %s109
    %p121 = scmp.eq.s32.totalorder %s17, 1
    %p122 = por %p120, %p121
    %p124 = scmp.ne.s32.totalorder %s109, %s123
    %p125 = scmp.eq.s32.totalorder %s17, 0
    %p126 = por %p124, %p125
    %s128 = sadd.s32 %s127, 1
    %p131 = scmp.eq.s32.totalorder %s11, 1
    %p132 = scmp.ne.s32.totalorder %s127, %s129
    %p133 = scmp.eq.s32.totalorder %s11, 0
    %p134 = por %p132, %p133
    %p135 = scmp.ne.s32.totalorder %s127, %s129
    %p136 = scmp.eq.s32.totalorder %s16, 1
    %p137 = por %p135, %p136
    %p138 = scmp.ne.s32.totalorder %s129, %s130
    %p139 = scmp.eq.s32.totalorder %s16, 0
    %p140 = por %p138, %p139
    %p141 = scmp.ne.s32.totalorder %s129, %s130
    %p142 = scmp.eq.s32.totalorder %s17, 1
    %p143 = por %p141, %p142
    %p145 = scmp.ne.s32.totalorder %s130, %s144
    %p146 = scmp.eq.s32.totalorder %s17, 0
    %p147 = por %p145, %p146
    %s148 = ssub.s32 %s18, %s30
    %p149 = scmp.eq.s32.totalorder %s148, 0
    %s151 = sadd.s32 %s150, 1
    %s152 = scalar_select %p149, %s150, %s151
    %p155 = pneg %p149
    %p156 = scmp.eq.s32.totalorder %s11, 1
    %p157 = por %p155, %p156
    %p158 = scmp.ne.s32.totalorder %s150, %s153
    %p159 = scmp.eq.s32.totalorder %s11, 0
    %p160 = por %p158, %p159
    %p161 = scmp.ne.s32.totalorder %s150, %s153
    %p162 = scmp.eq.s32.totalorder %s16, 1
    %p163 = por %p161, %p162
    %p164 = scmp.ne.s32.totalorder %s153, %s154
    %p165 = scmp.eq.s32.totalorder %s16, 0
    %p166 = por %p164, %p165
    %p167 = scmp.ne.s32.totalorder %s153, %s154
    %p168 = scmp.eq.s32.totalorder %s17, 1
    %p169 = por %p167, %p168
    %p171 = scmp.ne.s32.totalorder %s154, %s170
    %p172 = scmp.eq.s32.totalorder %s17, 0
    %p173 = por %p171, %p172
    %p174 = scmp.le.s32.totalorder 1, %s11
    %p175 = scmp.lt.s32.totalorder %s11, 3
    %p176 = pnand %p174, %p175
    %p177 = pneg %p176
    // Predicated region
    $region9: #{feedforward_block.4} parent=5 // pred_check
      _
    $region10: #{feedforward_block.4} parent=5 // pred_check_branch
      %179 = sbr.rel (%p176) target = $region12
    $region11: #{feedforward_block.4} parent=5 // pred_region
      %s180 = ssub.s32 %s11, 1
      // Predicated region
      $region13: #{feedforward_block.4} parent=11 // pred_check
        %p181 = pneg %p77
      $region14: #{feedforward_block.4} parent=11 // pred_check_branch
        %183 = sbr.rel (%p181) target = $region16
      $region15: #{feedforward_block.4} parent=11 // pred_region
        %s184 = smul.u32 64, %s21
        %p185 = scmp.lt.s32.totalorder %s184, 63
        %s186 = scalar_select %p185, %s184, 63
        %s187 = smul.addr %s186, 4
        %s188 = smul.addr %s187, 4
        %s189 = scalar_lea.vmem %s1, %s188
        %s190 = smul.u32 64, %s21
      $region16: #{feedforward_block.4} parent=11 // pred_fallthru
        _
      // Predicated region
      $region17: #{feedforward_block.4} parent=11 // pred_check
        %p191 = pneg %p98
      $region18: #{feedforward_block.4} parent=11 // pred_check_branch
        %193 = sbr.rel (%p191) target = $region20
      $region19: #{feedforward_block.4} parent=11 // pred_region
        _
      $region20: #{feedforward_block.4} parent=11 // pred_fallthru
        _
      // Predicated region
      $region21: #{feedforward_block.4} parent=11 // pred_check
        %p194 = pneg %p119
      $region22: #{feedforward_block.4} parent=11 // pred_check_branch
        %196 = sbr.rel (%p194) target = $region24
      $region23: #{feedforward_block.4} parent=11 // pred_region
        _
      $region24: #{feedforward_block.4} parent=11 // pred_fallthru
        _
      // Predicated region
      $region25: #{feedforward_block.4} parent=11 // pred_check
        %p197 = pneg %p140
      $region26: #{feedforward_block.4} parent=11 // pred_check_branch
        %199 = sbr.rel (%p197) target = $region28
      $region27: #{feedforward_block.4} parent=11 // pred_region
        _
      $region28: #{feedforward_block.4} parent=11 // pred_fallthru
        _
    $region12: #{feedforward_block.4} parent=5 // pred_fallthru
      _
    %p200 = scmp.lt.s32.totalorder %s11, 2
    // Predicated region
    $region29: #{feedforward_block.4} parent=5 // pred_check
      %p201 = pneg %p200
    $region30: #{feedforward_block.4} parent=5 // pred_check_branch
      %203 = sbr.rel (%p201) target = $region32
    $region31: #{feedforward_block.4} parent=5 // pred_region
      // Predicated region
      $region33: #{feedforward_block.4} parent=31 // pred_check
        %p204 = pneg %p45
      $region34: #{feedforward_block.4} parent=31 // pred_check_branch
        %206 = sbr.rel (%p204) target = $region36
      $region35: #{feedforward_block.4} parent=31 // pred_region
        %s207 = smul.u32 2, %s18
        %s208 = smul.u32 4, %s19
        %p209 = scmp.lt.s32.totalorder %s207, 3
        %s210 = scalar_select %p209, %s207, 3
        %p211 = scmp.lt.s32.totalorder %s208, 3
        %s212 = scalar_select %p211, %s208, 3
        %s213 = smul.addr %s210, 4
        %s214 = sadd.s32 %s212, %s213
        %s215 = smul.addr %s214, 4
        %s216 = scalar_lea.vmem %s0, %s215
        %s217 = smul.u32 2, %s18
        %s218 = smul.u32 4, %s19
      $region36: #{feedforward_block.4} parent=31 // pred_fallthru
        _
    $region32: #{feedforward_block.4} parent=5 // pred_fallthru
      _
    %p219 = scmp.le.s32.totalorder 1, %s11
    %p220 = scmp.lt.s32.totalorder %s11, 3
    %p221 = pnand %p219, %p220
    %p222 = pneg %p221
    // Predicated region
    $region37: #{feedforward_block.4} parent=5 // pred_check
      _
    $region38: #{feedforward_block.4} parent=5 // pred_check_branch
      %224 = sbr.rel (%p221) target = $region40
    $region39: #{feedforward_block.4} parent=5 // pred_region
      %s225 = ssub.s32 %s11, 1
      %s226 = smul.u32 2, %s20
      %s227 = smul.u32 4, %s21
      %p228 = scmp.lt.s32.totalorder %s226, 3
      %s229 = scalar_select %p228, %s226, 3
      %p230 = scmp.lt.s32.totalorder %s227, 3
      %s231 = scalar_select %p230, %s227, 3
      %s232 = smul.addr %s229, 4
      %s233 = sadd.s32 %s231, %s232
      %s234 = smul.addr %s233, 4
      %s235 = scalar_lea.vmem %s0, %s234
      %p236 = pneg %p51
      %p237 = pneg %p48
      %s238 = smul.u32 64, %s21
      %p239 = scmp.lt.s32.totalorder %s238, 63
      %s240 = scalar_select %p239, %s238, 63
      %s241 = smul.addr %s240, 4
      %s242 = smul.addr %s241, 4
      %s243 = scalar_lea.vmem %s1, %s242
      %p244 = pneg %p77
      %p245 = pneg %p74
      %p246 = pneg %p98
      %p247 = pneg %p95
      %p248 = pneg %p119
      %p249 = pneg %p116
      %p250 = pneg %p140
      %p251 = pneg %p137
      %p252 = pneg %p166
      %p253 = pneg %p163
      %s254 = smul.u32 2, %s20
      %p255 = scmp.lt.s32.totalorder %s254, 3
      %s256 = scalar_select %p255, %s254, 3
      %s257 = smul.addr %s256, 4
      %s258 = smul.addr %s257, 4
      %s259 = scalar_lea.vmem %s5, %s258
      %s260 = smul.u32 2, %s20
      %s261 = smul.u32 4, %s21
      %p262 = scmp.lt.s32.totalorder %s260, 3
      %s263 = scalar_select %p262, %s260, 3
      %p264 = scmp.lt.s32.totalorder %s261, 3
      %s265 = scalar_select %p264, %s261, 3
      %s266 = smul.addr %s263, 4
      %s267 = sadd.s32 %s265, %s266
      %s268 = smul.addr %s267, 4
      %s269 = scalar_lea.vmem %s0, %s268
      %s270 = smul.u32 2, %s20
      %s271 = smul.u32 4, %s21
      %s272 = smul.u32 64, %s21
      %p273 = scmp.lt.s32.totalorder %s272, 63
      %s274 = scalar_select %p273, %s272, 63
      %s275 = smul.addr %s274, 4
      %s276 = smul.addr %s275, 4
      %s277 = scalar_lea.vmem %s1, %s276
      %s278 = smul.u32 64, %s21
      %s279 = smul.u32 2, %s20
      %p280 = scmp.lt.s32.totalorder %s279, 3
      %s281 = scalar_select %p280, %s279, 3
      %s282 = smul.addr %s281, 4
      %s283 = smul.addr %s282, 4
      %s284 = scalar_lea.vmem %s5, %s283
      %s285 = smul.u32 2, %s20
      %p286 = scmp.eq.s32.totalorder %s21, 0
      // Predicated region
      $region41: #{feedforward_block.4} parent=39 // pred_check
        %p287 = pneg %p286
      $region42: #{feedforward_block.4} parent=39 // pred_check_branch
        %289 = sbr.rel (%p287) target = $region44
      $region43: #{feedforward_block.4} parent=39 // pred_region
        %v290 = vld [vmem:[%s2] sm:$0xf]
        %v292 = vlaneseq
        %v293 = vshrl.u32 %v292, 7
        %v294 = vsub.s32 0, %v293
        %v295 = vrot.slane %v290, %v294
        %v296 = vlaneseq
        %v297 = vshrl.u32 %v296, 7
        %v298 = vsub.s32 1, %v297
        %v299 = vrot.slane %v290, %v298
        %v300 = vlaneseq
        %v301 = vshrl.u32 %v300, 7
        %v302 = vsub.s32 2, %v301
        %v303 = vrot.slane %v290, %v302
        %v304 = vlaneseq
        %v305 = vshrl.u32 %v304, 7
        %v306 = vsub.s32 3, %v305
        %v307 = vrot.slane %v290, %v306
        %312 = vst [vmem:[#allocation2] sm:$0xff] %v295
        %313 = vst [vmem:[#allocation2 + $0x8] sm:$0xff] %v299
        %314 = vst [vmem:[#allocation2 + $0x10] sm:$0xff] %v303
        %315 = vst [vmem:[#allocation2 + $0x18] sm:$0xff] %v307
        %316 = vst [vmem:[#allocation2 + $0x20] sm:$0xff] %v295
        %317 = vst [vmem:[#allocation2 + $0x28] sm:$0xff] %v299
        %318 = vst [vmem:[#allocation2 + $0x30] sm:$0xff] %v303
        %319 = vst [vmem:[#allocation2 + $0x38] sm:$0xff] %v307
      $region44: #{feedforward_block.4} parent=39 // pred_fallthru
        _
      %v320 = vld [vmem:[#allocation2] sm:$0xff]
      %v321 = vld [vmem:[#allocation2 + $0x8] sm:$0xff]
      %v322 = vld [vmem:[#allocation2 + $0x10] sm:$0xff]
      %v323 = vld [vmem:[#allocation2 + $0x18] sm:$0xff]
      %v324 = vld [vmem:[#allocation2 + $0x20] sm:$0xff]
      %v325 = vld [vmem:[#allocation2 + $0x28] sm:$0xff]
      %v326 = vld [vmem:[#allocation2 + $0x30] sm:$0xff]
      %v327 = vld [vmem:[#allocation2 + $0x38] sm:$0xff]
      %v328 = vld [vmem:[%s269] sm:$0xff]
      %v329 = vld [vmem:[%s269 + $0x8] sm:$0xff]
      %v330 = vld [vmem:[%s269 + $0x10] sm:$0xff]
      %v331 = vld [vmem:[%s269 + $0x18] sm:$0xff]
      %v332 = vld [vmem:[%s277] sm:$0xff]
      %v333 = vld [vmem:[%s277 + $0x8] sm:$0xff]
      %v334 = vld [vmem:[%s277 + $0x10] sm:$0xff]
      %v335 = vld [vmem:[%s277 + $0x18] sm:$0xff]
      %v336 = vld [vmem:[%s277 + $0x20] sm:$0xff]
      %v337 = vld [vmem:[%s277 + $0x28] sm:$0xff]
      %v338 = vld [vmem:[%s277 + $0x30] sm:$0xff]
      %v339 = vld [vmem:[%s277 + $0x38] sm:$0xff]
      %v340 = vld [vmem:[%s277 + $0x40] sm:$0xff]
      %v341 = vld [vmem:[%s277 + $0x48] sm:$0xff]
      %v342 = vld [vmem:[%s277 + $0x50] sm:$0xff]
      %v343 = vld [vmem:[%s277 + $0x58] sm:$0xff]
      %v344 = vld [vmem:[%s277 + $0x60] sm:$0xff]
      %v345 = vld [vmem:[%s277 + $0x68] sm:$0xff]
      %v346 = vld [vmem:[%s277 + $0x70] sm:$0xff]
      %v347 = vld [vmem:[%s277 + $0x78] sm:$0xff]
      %v348 = vld [vmem:[%s277 + $0x80] sm:$0xff]
      %v349 = vld [vmem:[%s277 + $0x88] sm:$0xff]
      %v350 = vld [vmem:[%s277 + $0x90] sm:$0xff]
      %v351 = vld [vmem:[%s277 + $0x98] sm:$0xff]
      %v352 = vld [vmem:[%s277 + $0xa0] sm:$0xff]
      %v353 = vld [vmem:[%s277 + $0xa8] sm:$0xff]
      %v354 = vld [vmem:[%s277 + $0xb0] sm:$0xff]
      %v355 = vld [vmem:[%s277 + $0xb8] sm:$0xff]
      %v356 = vld [vmem:[%s277 + $0xc0] sm:$0xff]
      %v357 = vld [vmem:[%s277 + $0xc8] sm:$0xff]
      %v358 = vld [vmem:[%s277 + $0xd0] sm:$0xff]
      %v359 = vld [vmem:[%s277 + $0xd8] sm:$0xff]
      %v360 = vld [vmem:[%s277 + $0xe0] sm:$0xff]
      %v361 = vld [vmem:[%s277 + $0xe8] sm:$0xff]
      %v362 = vld [vmem:[%s277 + $0xf0] sm:$0xff]
      %v363 = vld [vmem:[%s277 + $0xf8] sm:$0xff]
      %v364 = vld [vmem:[%s277 + $0x100] sm:$0xff]
      %v365 = vld [vmem:[%s277 + $0x108] sm:$0xff]
      %v366 = vld [vmem:[%s277 + $0x110] sm:$0xff]
      %v367 = vld [vmem:[%s277 + $0x118] sm:$0xff]
      %v368 = vld [vmem:[%s277 + $0x120] sm:$0xff]
      %v369 = vld [vmem:[%s277 + $0x128] sm:$0xff]
      %v370 = vld [vmem:[%s277 + $0x130] sm:$0xff]
      %v371 = vld [vmem:[%s277 + $0x138] sm:$0xff]
      %v372 = vld [vmem:[%s277 + $0x140] sm:$0xff]
      %v373 = vld [vmem:[%s277 + $0x148] sm:$0xff]
      %v374 = vld [vmem:[%s277 + $0x150] sm:$0xff]
      %v375 = vld [vmem:[%s277 + $0x158] sm:$0xff]
      %v376 = vld [vmem:[%s277 + $0x160] sm:$0xff]
      %v377 = vld [vmem:[%s277 + $0x168] sm:$0xff]
      %v378 = vld [vmem:[%s277 + $0x170] sm:$0xff]
      %v379 = vld [vmem:[%s277 + $0x178] sm:$0xff]
      %v380 = vld [vmem:[%s277 + $0x180] sm:$0xff]
      %v381 = vld [vmem:[%s277 + $0x188] sm:$0xff]
      %v382 = vld [vmem:[%s277 + $0x190] sm:$0xff]
      %v383 = vld [vmem:[%s277 + $0x198] sm:$0xff]
      %v384 = vld [vmem:[%s277 + $0x1a0] sm:$0xff]
      %v385 = vld [vmem:[%s277 + $0x1a8] sm:$0xff]
      %v386 = vld [vmem:[%s277 + $0x1b0] sm:$0xff]
      %v387 = vld [vmem:[%s277 + $0x1b8] sm:$0xff]
      %v388 = vld [vmem:[%s277 + $0x1c0] sm:$0xff]
      %v389 = vld [vmem:[%s277 + $0x1c8] sm:$0xff]
      %v390 = vld [vmem:[%s277 + $0x1d0] sm:$0xff]
      %v391 = vld [vmem:[%s277 + $0x1d8] sm:$0xff]
      %v392 = vld [vmem:[%s277 + $0x1e0] sm:$0xff]
      %v393 = vld [vmem:[%s277 + $0x1e8] sm:$0xff]
      %v394 = vld [vmem:[%s277 + $0x1f0] sm:$0xff]
      %v395 = vld [vmem:[%s277 + $0x1f8] sm:$0xff]
      %v396 = vld [vmem:[%s277 + $0x200] sm:$0xff]
      %v397 = vld [vmem:[%s277 + $0x208] sm:$0xff]
      %v398 = vld [vmem:[%s277 + $0x210] sm:$0xff]
      %v399 = vld [vmem:[%s277 + $0x218] sm:$0xff]
      %v400 = vld [vmem:[%s277 + $0x220] sm:$0xff]
      %v401 = vld [vmem:[%s277 + $0x228] sm:$0xff]
      %v402 = vld [vmem:[%s277 + $0x230] sm:$0xff]
      %v403 = vld [vmem:[%s277 + $0x238] sm:$0xff]
      %v404 = vld [vmem:[%s277 + $0x240] sm:$0xff]
      %v405 = vld [vmem:[%s277 + $0x248] sm:$0xff]
      %v406 = vld [vmem:[%s277 + $0x250] sm:$0xff]
      %v407 = vld [vmem:[%s277 + $0x258] sm:$0xff]
      %v408 = vld [vmem:[%s277 + $0x260] sm:$0xff]
      %v409 = vld [vmem:[%s277 + $0x268] sm:$0xff]
      %v410 = vld [vmem:[%s277 + $0x270] sm:$0xff]
      %v411 = vld [vmem:[%s277 + $0x278] sm:$0xff]
      %v412 = vld [vmem:[%s277 + $0x280] sm:$0xff]
      %v413 = vld [vmem:[%s277 + $0x288] sm:$0xff]
      %v414 = vld [vmem:[%s277 + $0x290] sm:$0xff]
      %v415 = vld [vmem:[%s277 + $0x298] sm:$0xff]
      %v416 = vld [vmem:[%s277 + $0x2a0] sm:$0xff]
      %v417 = vld [vmem:[%s277 + $0x2a8] sm:$0xff]
      %v418 = vld [vmem:[%s277 + $0x2b0] sm:$0xff]
      %v419 = vld [vmem:[%s277 + $0x2b8] sm:$0xff]
      %v420 = vld [vmem:[%s277 + $0x2c0] sm:$0xff]
      %v421 = vld [vmem:[%s277 + $0x2c8] sm:$0xff]
      %v422 = vld [vmem:[%s277 + $0x2d0] sm:$0xff]
      %v423 = vld [vmem:[%s277 + $0x2d8] sm:$0xff]
      %v424 = vld [vmem:[%s277 + $0x2e0] sm:$0xff]
      %v425 = vld [vmem:[%s277 + $0x2e8] sm:$0xff]
      %v426 = vld [vmem:[%s277 + $0x2f0] sm:$0xff]
      %v427 = vld [vmem:[%s277 + $0x2f8] sm:$0xff]
      %v428 = vld [vmem:[%s277 + $0x300] sm:$0xff]
      %v429 = vld [vmem:[%s277 + $0x308] sm:$0xff]
      %v430 = vld [vmem:[%s277 + $0x310] sm:$0xff]
      %v431 = vld [vmem:[%s277 + $0x318] sm:$0xff]
      %v432 = vld [vmem:[%s277 + $0x320] sm:$0xff]
      %v433 = vld [vmem:[%s277 + $0x328] sm:$0xff]
      %v434 = vld [vmem:[%s277 + $0x330] sm:$0xff]
      %v435 = vld [vmem:[%s277 + $0x338] sm:$0xff]
      %v436 = vld [vmem:[%s277 + $0x340] sm:$0xff]
      %v437 = vld [vmem:[%s277 + $0x348] sm:$0xff]
      %v438 = vld [vmem:[%s277 + $0x350] sm:$0xff]
      %v439 = vld [vmem:[%s277 + $0x358] sm:$0xff]
      %v440 = vld [vmem:[%s277 + $0x360] sm:$0xff]
      %v441 = vld [vmem:[%s277 + $0x368] sm:$0xff]
      %v442 = vld [vmem:[%s277 + $0x370] sm:$0xff]
      %v443 = vld [vmem:[%s277 + $0x378] sm:$0xff]
      %v444 = vld [vmem:[%s277 + $0x380] sm:$0xff]
      %v445 = vld [vmem:[%s277 + $0x388] sm:$0xff]
      %v446 = vld [vmem:[%s277 + $0x390] sm:$0xff]
      %v447 = vld [vmem:[%s277 + $0x398] sm:$0xff]
      %v448 = vld [vmem:[%s277 + $0x3a0] sm:$0xff]
      %v449 = vld [vmem:[%s277 + $0x3a8] sm:$0xff]
      %v450 = vld [vmem:[%s277 + $0x3b0] sm:$0xff]
      %v451 = vld [vmem:[%s277 + $0x3b8] sm:$0xff]
      %v452 = vld [vmem:[%s277 + $0x3c0] sm:$0xff]
      %v453 = vld [vmem:[%s277 + $0x3c8] sm:$0xff]
      %v454 = vld [vmem:[%s277 + $0x3d0] sm:$0xff]
      %v455 = vld [vmem:[%s277 + $0x3d8] sm:$0xff]
      %v456 = vld [vmem:[%s277 + $0x3e0] sm:$0xff]
      %v457 = vld [vmem:[%s277 + $0x3e8] sm:$0xff]
      %v458 = vld [vmem:[%s277 + $0x3f0] sm:$0xff]
      %v459 = vld [vmem:[%s277 + $0x3f8] sm:$0xff]
      %v464 = vunpack.c.l.b16 %v328
      %v465 = vunpack.c.h.b16 %v328
      %v466 = vunpack.c.l.b16 %v329
      %v467 = vunpack.c.h.b16 %v329
      %v468 = vunpack.c.l.b16 %v330
      %v469 = vunpack.c.h.b16 %v330
      %v470 = vunpack.c.l.b16 %v331
      %v471 = vunpack.c.h.b16 %v331
      %v472 = vpack.c.b16 %v468, %v464
      %v473 = vpack.c.b16 %v469, %v465
      %v474 = vpack.c.b16 %v470, %v466
      %v475 = vpack.c.b16 %v471, %v467
      %v608 = vunpack.c.l.b16 %v332
      %v609 = vunpack.c.h.b16 %v332
      %v610 = vunpack.c.l.b16 %v333
      %v611 = vunpack.c.h.b16 %v333
      %v612 = vunpack.c.l.b16 %v334
      %v613 = vunpack.c.h.b16 %v334
      %v614 = vunpack.c.l.b16 %v335
      %v615 = vunpack.c.h.b16 %v335
      %v616 = vunpack.c.l.b16 %v336
      %v617 = vunpack.c.h.b16 %v336
      %v618 = vunpack.c.l.b16 %v337
      %v619 = vunpack.c.h.b16 %v337
      %v620 = vunpack.c.l.b16 %v338
      %v621 = vunpack.c.h.b16 %v338
      %v622 = vunpack.c.l.b16 %v339
      %v623 = vunpack.c.h.b16 %v339
      %v624 = vunpack.c.l.b16 %v340
      %v625 = vunpack.c.h.b16 %v340
      %v626 = vunpack.c.l.b16 %v341
      %v627 = vunpack.c.h.b16 %v341
      %v628 = vunpack.c.l.b16 %v342
      %v629 = vunpack.c.h.b16 %v342
      %v630 = vunpack.c.l.b16 %v343
      %v631 = vunpack.c.h.b16 %v343
      %v632 = vunpack.c.l.b16 %v344
      %v633 = vunpack.c.h.b16 %v344
      %v634 = vunpack.c.l.b16 %v345
      %v635 = vunpack.c.h.b16 %v345
      %v636 = vunpack.c.l.b16 %v346
      %v637 = vunpack.c.h.b16 %v346
      %v638 = vunpack.c.l.b16 %v347
      %v639 = vunpack.c.h.b16 %v347
      %v640 = vunpack.c.l.b16 %v348
      %v641 = vunpack.c.h.b16 %v348
      %v642 = vunpack.c.l.b16 %v349
      %v643 = vunpack.c.h.b16 %v349
      %v644 = vunpack.c.l.b16 %v350
      %v645 = vunpack.c.h.b16 %v350
      %v646 = vunpack.c.l.b16 %v351
      %v647 = vunpack.c.h.b16 %v351
      %v648 = vunpack.c.l.b16 %v352
      %v649 = vunpack.c.h.b16 %v352
      %v650 = vunpack.c.l.b16 %v353
      %v651 = vunpack.c.h.b16 %v353
      %v652 = vunpack.c.l.b16 %v354
      %v653 = vunpack.c.h.b16 %v354
      %v654 = vunpack.c.l.b16 %v355
      %v655 = vunpack.c.h.b16 %v355
      %v656 = vunpack.c.l.b16 %v356
      %v657 = vunpack.c.h.b16 %v356
      %v658 = vunpack.c.l.b16 %v357
      %v659 = vunpack.c.h.b16 %v357
      %v660 = vunpack.c.l.b16 %v358
      %v661 = vunpack.c.h.b16 %v358
      %v662 = vunpack.c.l.b16 %v359
      %v663 = vunpack.c.h.b16 %v359
      %v664 = vunpack.c.l.b16 %v360
      %v665 = vunpack.c.h.b16 %v360
      %v666 = vunpack.c.l.b16 %v361
      %v667 = vunpack.c.h.b16 %v361
      %v668 = vunpack.c.l.b16 %v362
      %v669 = vunpack.c.h.b16 %v362
      %v670 = vunpack.c.l.b16 %v363
      %v671 = vunpack.c.h.b16 %v363
      %v672 = vunpack.c.l.b16 %v364
      %v673 = vunpack.c.h.b16 %v364
      %v674 = vunpack.c.l.b16 %v365
      %v675 = vunpack.c.h.b16 %v365
      %v676 = vunpack.c.l.b16 %v366
      %v677 = vunpack.c.h.b16 %v366
      %v678 = vunpack.c.l.b16 %v367
      %v679 = vunpack.c.h.b16 %v367
      %v680 = vunpack.c.l.b16 %v368
      %v681 = vunpack.c.h.b16 %v368
      %v682 = vunpack.c.l.b16 %v369
      %v683 = vunpack.c.h.b16 %v369
      %v684 = vunpack.c.l.b16 %v370
      %v685 = vunpack.c.h.b16 %v370
      %v686 = vunpack.c.l.b16 %v371
      %v687 = vunpack.c.h.b16 %v371
      %v688 = vunpack.c.l.b16 %v372
      %v689 = vunpack.c.h.b16 %v372
      %v690 = vunpack.c.l.b16 %v373
      %v691 = vunpack.c.h.b16 %v373
      %v692 = vunpack.c.l.b16 %v374
      %v693 = vunpack.c.h.b16 %v374
      %v694 = vunpack.c.l.b16 %v375
      %v695 = vunpack.c.h.b16 %v375
      %v696 = vunpack.c.l.b16 %v376
      %v697 = vunpack.c.h.b16 %v376
      %v698 = vunpack.c.l.b16 %v377
      %v699 = vunpack.c.h.b16 %v377
      %v700 = vunpack.c.l.b16 %v378
      %v701 = vunpack.c.h.b16 %v378
      %v702 = vunpack.c.l.b16 %v379
      %v703 = vunpack.c.h.b16 %v379
      %v704 = vunpack.c.l.b16 %v380
      %v705 = vunpack.c.h.b16 %v380
      %v706 = vunpack.c.l.b16 %v381
      %v707 = vunpack.c.h.b16 %v381
      %v708 = vunpack.c.l.b16 %v382
      %v709 = vunpack.c.h.b16 %v382
      %v710 = vunpack.c.l.b16 %v383
      %v711 = vunpack.c.h.b16 %v383
      %v712 = vunpack.c.l.b16 %v384
      %v713 = vunpack.c.h.b16 %v384
      %v714 = vunpack.c.l.b16 %v385
      %v715 = vunpack.c.h.b16 %v385
      %v716 = vunpack.c.l.b16 %v386
      %v717 = vunpack.c.h.b16 %v386
      %v718 = vunpack.c.l.b16 %v387
      %v719 = vunpack.c.h.b16 %v387
      %v720 = vunpack.c.l.b16 %v388
      %v721 = vunpack.c.h.b16 %v388
      %v722 = vunpack.c.l.b16 %v389
      %v723 = vunpack.c.h.b16 %v389
      %v724 = vunpack.c.l.b16 %v390
      %v725 = vunpack.c.h.b16 %v390
      %v726 = vunpack.c.l.b16 %v391
      %v727 = vunpack.c.h.b16 %v391
      %v728 = vunpack.c.l.b16 %v392
      %v729 = vunpack.c.h.b16 %v392
      %v730 = vunpack.c.l.b16 %v393
      %v731 = vunpack.c.h.b16 %v393
      %v732 = vunpack.c.l.b16 %v394
      %v733 = vunpack.c.h.b16 %v394
      %v734 = vunpack.c.l.b16 %v395
      %v735 = vunpack.c.h.b16 %v395
      %v736 = vunpack.c.l.b16 %v396
      %v737 = vunpack.c.h.b16 %v396
      %v738 = vunpack.c.l.b16 %v397
      %v739 = vunpack.c.h.b16 %v397
      %v740 = vunpack.c.l.b16 %v398
      %v741 = vunpack.c.h.b16 %v398
      %v742 = vunpack.c.l.b16 %v399
      %v743 = vunpack.c.h.b16 %v399
      %v744 = vunpack.c.l.b16 %v400
      %v745 = vunpack.c.h.b16 %v400
      %v746 = vunpack.c.l.b16 %v401
      %v747 = vunpack.c.h.b16 %v401
      %v748 = vunpack.c.l.b16 %v402
      %v749 = vunpack.c.h.b16 %v402
      %v750 = vunpack.c.l.b16 %v403
      %v751 = vunpack.c.h.b16 %v403
      %v752 = vunpack.c.l.b16 %v404
      %v753 = vunpack.c.h.b16 %v404
      %v754 = vunpack.c.l.b16 %v405
      %v755 = vunpack.c.h.b16 %v405
      %v756 = vunpack.c.l.b16 %v406
      %v757 = vunpack.c.h.b16 %v406
      %v758 = vunpack.c.l.b16 %v407
      %v759 = vunpack.c.h.b16 %v407
      %v760 = vunpack.c.l.b16 %v408
      %v761 = vunpack.c.h.b16 %v408
      %v762 = vunpack.c.l.b16 %v409
      %v763 = vunpack.c.h.b16 %v409
      %v764 = vunpack.c.l.b16 %v410
      %v765 = vunpack.c.h.b16 %v410
      %v766 = vunpack.c.l.b16 %v411
      %v767 = vunpack.c.h.b16 %v411
      %v768 = vunpack.c.l.b16 %v412
      %v769 = vunpack.c.h.b16 %v412
      %v770 = vunpack.c.l.b16 %v413
      %v771 = vunpack.c.h.b16 %v413
      %v772 = vunpack.c.l.b16 %v414
      %v773 = vunpack.c.h.b16 %v414
      %v774 = vunpack.c.l.b16 %v415
      %v775 = vunpack.c.h.b16 %v415
      %v776 = vunpack.c.l.b16 %v416
      %v777 = vunpack.c.h.b16 %v416
      %v778 = vunpack.c.l.b16 %v417
      %v779 = vunpack.c.h.b16 %v417
      %v780 = vunpack.c.l.b16 %v418
      %v781 = vunpack.c.h.b16 %v418
      %v782 = vunpack.c.l.b16 %v419
      %v783 = vunpack.c.h.b16 %v419
      %v784 = vunpack.c.l.b16 %v420
      %v785 = vunpack.c.h.b16 %v420
      %v786 = vunpack.c.l.b16 %v421
      %v787 = vunpack.c.h.b16 %v421
      %v788 = vunpack.c.l.b16 %v422
      %v789 = vunpack.c.h.b16 %v422
      %v790 = vunpack.c.l.b16 %v423
      %v791 = vunpack.c.h.b16 %v423
      %v792 = vunpack.c.l.b16 %v424
      %v793 = vunpack.c.h.b16 %v424
      %v794 = vunpack.c.l.b16 %v425
      %v795 = vunpack.c.h.b16 %v425
      %v796 = vunpack.c.l.b16 %v426
      %v797 = vunpack.c.h.b16 %v426
      %v798 = vunpack.c.l.b16 %v427
      %v799 = vunpack.c.h.b16 %v427
      %v800 = vunpack.c.l.b16 %v428
      %v801 = vunpack.c.h.b16 %v428
      %v802 = vunpack.c.l.b16 %v429
      %v803 = vunpack.c.h.b16 %v429
      %v804 = vunpack.c.l.b16 %v430
      %v805 = vunpack.c.h.b16 %v430
      %v806 = vunpack.c.l.b16 %v431
      %v807 = vunpack.c.h.b16 %v431
      %v808 = vunpack.c.l.b16 %v432
      %v809 = vunpack.c.h.b16 %v432
      %v810 = vunpack.c.l.b16 %v433
      %v811 = vunpack.c.h.b16 %v433
      %v812 = vunpack.c.l.b16 %v434
      %v813 = vunpack.c.h.b16 %v434
      %v814 = vunpack.c.l.b16 %v435
      %v815 = vunpack.c.h.b16 %v435
      %v816 = vunpack.c.l.b16 %v436
      %v817 = vunpack.c.h.b16 %v436
      %v818 = vunpack.c.l.b16 %v437
      %v819 = vunpack.c.h.b16 %v437
      %v820 = vunpack.c.l.b16 %v438
      %v821 = vunpack.c.h.b16 %v438
      %v822 = vunpack.c.l.b16 %v439
      %v823 = vunpack.c.h.b16 %v439
      %v824 = vunpack.c.l.b16 %v440
      %v825 = vunpack.c.h.b16 %v440
      %v826 = vunpack.c.l.b16 %v441
      %v827 = vunpack.c.h.b16 %v441
      %v828 = vunpack.c.l.b16 %v442
      %v829 = vunpack.c.h.b16 %v442
      %v830 = vunpack.c.l.b16 %v443
      %v831 = vunpack.c.h.b16 %v443
      %v832 = vunpack.c.l.b16 %v444
      %v833 = vunpack.c.h.b16 %v444
      %v834 = vunpack.c.l.b16 %v445
      %v835 = vunpack.c.h.b16 %v445
      %v836 = vunpack.c.l.b16 %v446
      %v837 = vunpack.c.h.b16 %v446
      %v838 = vunpack.c.l.b16 %v447
      %v839 = vunpack.c.h.b16 %v447
      %v840 = vunpack.c.l.b16 %v448
      %v841 = vunpack.c.h.b16 %v448
      %v842 = vunpack.c.l.b16 %v449
      %v843 = vunpack.c.h.b16 %v449
      %v844 = vunpack.c.l.b16 %v450
      %v845 = vunpack.c.h.b16 %v450
      %v846 = vunpack.c.l.b16 %v451
      %v847 = vunpack.c.h.b16 %v451
      %v848 = vunpack.c.l.b16 %v452
      %v849 = vunpack.c.h.b16 %v452
      %v850 = vunpack.c.l.b16 %v453
      %v851 = vunpack.c.h.b16 %v453
      %v852 = vunpack.c.l.b16 %v454
      %v853 = vunpack.c.h.b16 %v454
      %v854 = vunpack.c.l.b16 %v455
      %v855 = vunpack.c.h.b16 %v455
      %v856 = vunpack.c.l.b16 %v456
      %v857 = vunpack.c.h.b16 %v456
      %v858 = vunpack.c.l.b16 %v457
      %v859 = vunpack.c.h.b16 %v457
      %v860 = vunpack.c.l.b16 %v458
      %v861 = vunpack.c.h.b16 %v458
      %v862 = vunpack.c.l.b16 %v459
      %v863 = vunpack.c.h.b16 %v459
      %v864 = vpack.c.b16 %v612, %v608
      %v865 = vpack.c.b16 %v613, %v609
      %v866 = vpack.c.b16 %v614, %v610
      %v867 = vpack.c.b16 %v615, %v611
      %v868 = vpack.c.b16 %v620, %v616
      %v869 = vpack.c.b16 %v621, %v617
      %v870 = vpack.c.b16 %v622, %v618
      %v871 = vpack.c.b16 %v623, %v619
      %v872 = vpack.c.b16 %v628, %v624
      %v873 = vpack.c.b16 %v629, %v625
      %v874 = vpack.c.b16 %v630, %v626
      %v875 = vpack.c.b16 %v631, %v627
      %v876 = vpack.c.b16 %v636, %v632
      %v877 = vpack.c.b16 %v637, %v633
      %v878 = vpack.c.b16 %v638, %v634
      %v879 = vpack.c.b16 %v639, %v635
      %v880 = vpack.c.b16 %v644, %v640
      %v881 = vpack.c.b16 %v645, %v641
      %v882 = vpack.c.b16 %v646, %v642
      %v883 = vpack.c.b16 %v647, %v643
      %v884 = vpack.c.b16 %v652, %v648
      %v885 = vpack.c.b16 %v653, %v649
      %v886 = vpack.c.b16 %v654, %v650
      %v887 = vpack.c.b16 %v655, %v651
      %v888 = vpack.c.b16 %v660, %v656
      %v889 = vpack.c.b16 %v661, %v657
      %v890 = vpack.c.b16 %v662, %v658
      %v891 = vpack.c.b16 %v663, %v659
      %v892 = vpack.c.b16 %v668, %v664
      %v893 = vpack.c.b16 %v669, %v665
      %v894 = vpack.c.b16 %v670, %v666
      %v895 = vpack.c.b16 %v671, %v667
      %v896 = vpack.c.b16 %v676, %v672
      %v897 = vpack.c.b16 %v677, %v673
      %v898 = vpack.c.b16 %v678, %v674
      %v899 = vpack.c.b16 %v679, %v675
      %v900 = vpack.c.b16 %v684, %v680
      %v901 = vpack.c.b16 %v685, %v681
      %v902 = vpack.c.b16 %v686, %v682
      %v903 = vpack.c.b16 %v687, %v683
      %v904 = vpack.c.b16 %v692, %v688
      %v905 = vpack.c.b16 %v693, %v689
      %v906 = vpack.c.b16 %v694, %v690
      %v907 = vpack.c.b16 %v695, %v691
      %v908 = vpack.c.b16 %v700, %v696
      %v909 = vpack.c.b16 %v701, %v697
      %v910 = vpack.c.b16 %v702, %v698
      %v911 = vpack.c.b16 %v703, %v699
      %v912 = vpack.c.b16 %v708, %v704
      %v913 = vpack.c.b16 %v709, %v705
      %v914 = vpack.c.b16 %v710, %v706
      %v915 = vpack.c.b16 %v711, %v707
      %v916 = vpack.c.b16 %v716, %v712
      %v917 = vpack.c.b16 %v717, %v713
      %v918 = vpack.c.b16 %v718, %v714
      %v919 = vpack.c.b16 %v719, %v715
      %v920 = vpack.c.b16 %v724, %v720
      %v921 = vpack.c.b16 %v725, %v721
      %v922 = vpack.c.b16 %v726, %v722
      %v923 = vpack.c.b16 %v727, %v723
      %v924 = vpack.c.b16 %v732, %v728
      %v925 = vpack.c.b16 %v733, %v729
      %v926 = vpack.c.b16 %v734, %v730
      %v927 = vpack.c.b16 %v735, %v731
      %v928 = vpack.c.b16 %v740, %v736
      %v929 = vpack.c.b16 %v741, %v737
      %v930 = vpack.c.b16 %v742, %v738
      %v931 = vpack.c.b16 %v743, %v739
      %v932 = vpack.c.b16 %v748, %v744
      %v933 = vpack.c.b16 %v749, %v745
      %v934 = vpack.c.b16 %v750, %v746
      %v935 = vpack.c.b16 %v751, %v747
      %v936 = vpack.c.b16 %v756, %v752
      %v937 = vpack.c.b16 %v757, %v753
      %v938 = vpack.c.b16 %v758, %v754
      %v939 = vpack.c.b16 %v759, %v755
      %v940 = vpack.c.b16 %v764, %v760
      %v941 = vpack.c.b16 %v765, %v761
      %v942 = vpack.c.b16 %v766, %v762
      %v943 = vpack.c.b16 %v767, %v763
      %v944 = vpack.c.b16 %v772, %v768
      %v945 = vpack.c.b16 %v773, %v769
      %v946 = vpack.c.b16 %v774, %v770
      %v947 = vpack.c.b16 %v775, %v771
      %v948 = vpack.c.b16 %v780, %v776
      %v949 = vpack.c.b16 %v781, %v777
      %v950 = vpack.c.b16 %v782, %v778
      %v951 = vpack.c.b16 %v783, %v779
      %v952 = vpack.c.b16 %v788, %v784
      %v953 = vpack.c.b16 %v789, %v785
      %v954 = vpack.c.b16 %v790, %v786
      %v955 = vpack.c.b16 %v791, %v787
      %v956 = vpack.c.b16 %v796, %v792
      %v957 = vpack.c.b16 %v797, %v793
      %v958 = vpack.c.b16 %v798, %v794
      %v959 = vpack.c.b16 %v799, %v795
      %v960 = vpack.c.b16 %v804, %v800
      %v961 = vpack.c.b16 %v805, %v801
      %v962 = vpack.c.b16 %v806, %v802
      %v963 = vpack.c.b16 %v807, %v803
      %v964 = vpack.c.b16 %v812, %v808
      %v965 = vpack.c.b16 %v813, %v809
      %v966 = vpack.c.b16 %v814, %v810
      %v967 = vpack.c.b16 %v815, %v811
      %v968 = vpack.c.b16 %v820, %v816
      %v969 = vpack.c.b16 %v821, %v817
      %v970 = vpack.c.b16 %v822, %v818
      %v971 = vpack.c.b16 %v823, %v819
      %v972 = vpack.c.b16 %v828, %v824
      %v973 = vpack.c.b16 %v829, %v825
      %v974 = vpack.c.b16 %v830, %v826
      %v975 = vpack.c.b16 %v831, %v827
      %v976 = vpack.c.b16 %v836, %v832
      %v977 = vpack.c.b16 %v837, %v833
      %v978 = vpack.c.b16 %v838, %v834
      %v979 = vpack.c.b16 %v839, %v835
      %v980 = vpack.c.b16 %v844, %v840
      %v981 = vpack.c.b16 %v845, %v841
      %v982 = vpack.c.b16 %v846, %v842
      %v983 = vpack.c.b16 %v847, %v843
      %v984 = vpack.c.b16 %v852, %v848
      %v985 = vpack.c.b16 %v853, %v849
      %v986 = vpack.c.b16 %v854, %v850
      %v987 = vpack.c.b16 %v855, %v851
      %v988 = vpack.c.b16 %v860, %v856
      %v989 = vpack.c.b16 %v861, %v857
      %v990 = vpack.c.b16 %v862, %v858
      %v991 = vpack.c.b16 %v863, %v859
      %1120 = vmatprep.subr.bf16.mxu0 %v865
      %1121 = vmatpush1.bf16.msra.mxu0 %v864
      %1122 = vmatprep.subr.bf16.mxu0 %v869
      %1123 = vmatpush1.bf16.msra.mxu0 %v868
      %1124 = vmatprep.subr.bf16.mxu0 %v873
      %1125 = vmatpush1.bf16.msra.mxu0 %v872
      %1126 = vmatprep.subr.bf16.mxu0 %v877
      %1127 = vmatpush1.bf16.msra.mxu0 %v876
      %1128 = vmatprep.subr.bf16.mxu0 %v881
      %1129 = vmatpush1.bf16.msra.mxu0 %v880
      %1130 = vmatprep.subr.bf16.mxu0 %v885
      %1131 = vmatpush1.bf16.msra.mxu0 %v884
      %1132 = vmatprep.subr.bf16.mxu0 %v889
      %1133 = vmatpush1.bf16.msra.mxu0 %v888
      %1134 = vmatprep.subr.bf16.mxu0 %v893
      %1135 = vmatpush1.bf16.msra.mxu0 %v892
      %1136 = vmatprep.subr.bf16.mxu0 %v897
      %1137 = vmatpush1.bf16.msra.mxu0 %v896
      %1138 = vmatprep.subr.bf16.mxu0 %v901
      %1139 = vmatpush1.bf16.msra.mxu0 %v900
      %1140 = vmatprep.subr.bf16.mxu0 %v905
      %1141 = vmatpush1.bf16.msra.mxu0 %v904
      %1142 = vmatprep.subr.bf16.mxu0 %v909
      %1143 = vmatpush1.bf16.msra.mxu0 %v908
      %1144 = vmatprep.subr.bf16.mxu0 %v913
      %1145 = vmatpush1.bf16.msra.mxu0 %v912
      %1146 = vmatprep.subr.bf16.mxu0 %v917
      %1147 = vmatpush1.bf16.msra.mxu0 %v916
      %1148 = vmatprep.subr.bf16.mxu0 %v921
      %1149 = vmatpush1.bf16.msra.mxu0 %v920
      %1150 = vmatprep.subr.bf16.mxu0 %v925
      %1151 = vmatpush1.bf16.msra.mxu0 %v924
      %1152 = vmatprep.mubr.bf16.mxu0 %v473
      %1153 = vmatmul.mubr.bf16.gmra.mrb[0].mxu0 %v472
      %v1154 = vpop.f32.mrb[0].mxu0
      %v1155 = vadd.f32 0.0, %v1154
      %v1156 = vpop.f32.mrb[0].mxu0
      %v1157 = vadd.f32 0.0, %v1156
      %v1158 = vpop.f32.mrb[0].mxu0
      %v1159 = vadd.f32 0.0, %v1158
      %v1160 = vpop.f32.mrb[0].mxu0
      %v1161 = vadd.f32 0.0, %v1160
      %1162 = vdwg.mxu0
      %1163 = vmatprep.subr.bf16.mxu0 %v929
      %1164 = vmatpush1.bf16.msra.mxu0 %v928
      %1165 = vmatprep.subr.bf16.mxu0 %v933
      %1166 = vmatpush1.bf16.msra.mxu0 %v932
      %1167 = vmatprep.subr.bf16.mxu0 %v937
      %1168 = vmatpush1.bf16.msra.mxu0 %v936
      %1169 = vmatprep.subr.bf16.mxu0 %v941
      %1170 = vmatpush1.bf16.msra.mxu0 %v940
      %1171 = vmatprep.subr.bf16.mxu0 %v945
      %1172 = vmatpush1.bf16.msra.mxu0 %v944
      %1173 = vmatprep.subr.bf16.mxu0 %v949
      %1174 = vmatpush1.bf16.msra.mxu0 %v948
      %1175 = vmatprep.subr.bf16.mxu0 %v953
      %1176 = vmatpush1.bf16.msra.mxu0 %v952
      %1177 = vmatprep.subr.bf16.mxu0 %v957
      %1178 = vmatpush1.bf16.msra.mxu0 %v956
      %1179 = vmatprep.subr.bf16.mxu0 %v961
      %1180 = vmatpush1.bf16.msra.mxu0 %v960
      %1181 = vmatprep.subr.bf16.mxu0 %v965
      %1182 = vmatpush1.bf16.msra.mxu0 %v964
      %1183 = vmatprep.subr.bf16.mxu0 %v969
      %1184 = vmatpush1.bf16.msra.mxu0 %v968
      %1185 = vmatprep.subr.bf16.mxu0 %v973
      %1186 = vmatpush1.bf16.msra.mxu0 %v972
      %1187 = vmatprep.subr.bf16.mxu0 %v977
      %1188 = vmatpush1.bf16.msra.mxu0 %v976
      %1189 = vmatprep.subr.bf16.mxu0 %v981
      %1190 = vmatpush1.bf16.msra.mxu0 %v980
      %1191 = vmatprep.subr.bf16.mxu0 %v985
      %1192 = vmatpush1.bf16.msra.mxu0 %v984
      %1193 = vmatprep.subr.bf16.mxu0 %v989
      %1194 = vmatpush1.bf16.msra.mxu0 %v988
      %1195 = vmatprep.mubr.bf16.mxu0 %v475
      %1196 = vmatmul.mubr.bf16.gmra.mrb[0].mxu0 %v474
      %v1197 = vpop.f32.mrb[0].mxu0
      %v1198 = vadd.f32 %v1155, %v1197
      %v1199 = vpop.f32.mrb[0].mxu0
      %v1200 = vadd.f32 %v1157, %v1199
      %v1201 = vpop.f32.mrb[0].mxu0
      %v1202 = vadd.f32 %v1159, %v1201
      %v1203 = vpop.f32.mrb[0].mxu0
      %v1204 = vadd.f32 %v1161, %v1203
      %1205 = vdwg.mxu0
      %1206 = vmatprep.subr.bf16.mxu0 %v867
      %1207 = vmatpush1.bf16.msra.mxu0 %v866
      %1208 = vmatprep.subr.bf16.mxu0 %v871
      %1209 = vmatpush1.bf16.msra.mxu0 %v870
      %1210 = vmatprep.subr.bf16.mxu0 %v875
      %1211 = vmatpush1.bf16.msra.mxu0 %v874
      %1212 = vmatprep.subr.bf16.mxu0 %v879
      %1213 = vmatpush1.bf16.msra.mxu0 %v878
      %1214 = vmatprep.subr.bf16.mxu0 %v883
      %1215 = vmatpush1.bf16.msra.mxu0 %v882
      %1216 = vmatprep.subr.bf16.mxu0 %v887
      %1217 = vmatpush1.bf16.msra.mxu0 %v886
      %1218 = vmatprep.subr.bf16.mxu0 %v891
      %1219 = vmatpush1.bf16.msra.mxu0 %v890
      %1220 = vmatprep.subr.bf16.mxu0 %v895
      %1221 = vmatpush1.bf16.msra.mxu0 %v894
      %1222 = vmatprep.subr.bf16.mxu0 %v899
      %1223 = vmatpush1.bf16.msra.mxu0 %v898
      %1224 = vmatprep.subr.bf16.mxu0 %v903
      %1225 = vmatpush1.bf16.msra.mxu0 %v902
      %1226 = vmatprep.subr.bf16.mxu0 %v907
      %1227 = vmatpush1.bf16.msra.mxu0 %v906
      %1228 = vmatprep.subr.bf16.mxu0 %v911
      %1229 = vmatpush1.bf16.msra.mxu0 %v910
      %1230 = vmatprep.subr.bf16.mxu0 %v915
      %1231 = vmatpush1.bf16.msra.mxu0 %v914
      %1232 = vmatprep.subr.bf16.mxu0 %v919
      %1233 = vmatpush1.bf16.msra.mxu0 %v918
      %1234 = vmatprep.subr.bf16.mxu0 %v923
      %1235 = vmatpush1.bf16.msra.mxu0 %v922
      %1236 = vmatprep.subr.bf16.mxu0 %v927
      %1237 = vmatpush1.bf16.msra.mxu0 %v926
      %1238 = vmatprep.mubr.bf16.mxu0 %v473
      %1239 = vmatmul.mubr.bf16.gmra.mrb[0].mxu0 %v472
      %v1240 = vpop.f32.mrb[0].mxu0
      %v1241 = vadd.f32 0.0, %v1240
      %v1242 = vpop.f32.mrb[0].mxu0
      %v1243 = vadd.f32 0.0, %v1242
      %v1244 = vpop.f32.mrb[0].mxu0
      %v1245 = vadd.f32 0.0, %v1244
      %v1246 = vpop.f32.mrb[0].mxu0
      %v1247 = vadd.f32 0.0, %v1246
      %1248 = vdwg.mxu0
      %1249 = vmatprep.subr.bf16.mxu0 %v931
      %1250 = vmatpush1.bf16.msra.mxu0 %v930
      %1251 = vmatprep.subr.bf16.mxu0 %v935
      %1252 = vmatpush1.bf16.msra.mxu0 %v934
      %1253 = vmatprep.subr.bf16.mxu0 %v939
      %1254 = vmatpush1.bf16.msra.mxu0 %v938
      %1255 = vmatprep.subr.bf16.mxu0 %v943
      %1256 = vmatpush1.bf16.msra.mxu0 %v942
      %1257 = vmatprep.subr.bf16.mxu0 %v947
      %1258 = vmatpush1.bf16.msra.mxu0 %v946
      %1259 = vmatprep.subr.bf16.mxu0 %v951
      %1260 = vmatpush1.bf16.msra.mxu0 %v950
      %1261 = vmatprep.subr.bf16.mxu0 %v955
      %1262 = vmatpush1.bf16.msra.mxu0 %v954
      %1263 = vmatprep.subr.bf16.mxu0 %v959
      %1264 = vmatpush1.bf16.msra.mxu0 %v958
      %1265 = vmatprep.subr.bf16.mxu0 %v963
      %1266 = vmatpush1.bf16.msra.mxu0 %v962
      %1267 = vmatprep.subr.bf16.mxu0 %v967
      %1268 = vmatpush1.bf16.msra.mxu0 %v966
      %1269 = vmatprep.subr.bf16.mxu0 %v971
      %1270 = vmatpush1.bf16.msra.mxu0 %v970
      %1271 = vmatprep.subr.bf16.mxu0 %v975
      %1272 = vmatpush1.bf16.msra.mxu0 %v974
      %1273 = vmatprep.subr.bf16.mxu0 %v979
      %1274 = vmatpush1.bf16.msra.mxu0 %v978
      %1275 = vmatprep.subr.bf16.mxu0 %v983
      %1276 = vmatpush1.bf16.msra.mxu0 %v982
      %1277 = vmatprep.subr.bf16.mxu0 %v987
      %1278 = vmatpush1.bf16.msra.mxu0 %v986
      %1279 = vmatprep.subr.bf16.mxu0 %v991
      %1280 = vmatpush1.bf16.msra.mxu0 %v990
      %1281 = vmatprep.mubr.bf16.mxu0 %v475
      %1282 = vmatmul.mubr.bf16.gmra.mrb[0].mxu0 %v474
      %v1283 = vpop.f32.mrb[0].mxu0
      %v1284 = vadd.f32 %v1241, %v1283
      %v1285 = vpop.f32.mrb[0].mxu0
      %v1286 = vadd.f32 %v1243, %v1285
      %v1287 = vpop.f32.mrb[0].mxu0
      %v1288 = vadd.f32 %v1245, %v1287
      %v1289 = vpop.f32.mrb[0].mxu0
      %v1290 = vadd.f32 %v1247, %v1289
      %1291 = vdwg.mxu0
      %v1292 = vadd.f32 %v320, %v1198
      %v1293 = vadd.f32 %v321, %v1200
      %v1294 = vadd.f32 %v322, %v1284
      %v1295 = vadd.f32 %v323, %v1286
      %v1296 = vadd.f32 %v324, %v1202
      %v1297 = vadd.f32 %v325, %v1204
      %v1298 = vadd.f32 %v326, %v1288
      %v1299 = vadd.f32 %v327, %v1290
      %1300 = vst [vmem:[#allocation2] sm:$0xff] %v1292
      %1301 = vst [vmem:[#allocation2 + $0x8] sm:$0xff] %v1293
      %1302 = vst [vmem:[#allocation2 + $0x10] sm:$0xff] %v1294
      %1303 = vst [vmem:[#allocation2 + $0x18] sm:$0xff] %v1295
      %1304 = vst [vmem:[#allocation2 + $0x20] sm:$0xff] %v1296
      %1305 = vst [vmem:[#allocation2 + $0x28] sm:$0xff] %v1297
      %1306 = vst [vmem:[#allocation2 + $0x30] sm:$0xff] %v1298
      %1307 = vst [vmem:[#allocation2 + $0x38] sm:$0xff] %v1299
      // Predicated region
      $region45: #{feedforward_block.4} parent=39 // pred_check
        %p1308 = pneg %p286
      $region46: #{feedforward_block.4} parent=39 // pred_check_branch
        %1310 = sbr.rel (%p1308) target = $region48
      $region47: #{feedforward_block.4} parent=39 // pred_region
        %v1311 = vld [vmem:[#allocation2] sm:$0xff]
        %v1312 = vld [vmem:[#allocation2 + $0x8] sm:$0xff]
        %v1313 = vld [vmem:[#allocation2 + $0x10] sm:$0xff]
        %v1314 = vld [vmem:[#allocation2 + $0x18] sm:$0xff]
        %v1315 = vld [vmem:[#allocation2 + $0x20] sm:$0xff]
        %v1316 = vld [vmem:[#allocation2 + $0x28] sm:$0xff]
        %v1317 = vld [vmem:[#allocation2 + $0x30] sm:$0xff]
        %v1318 = vld [vmem:[#allocation2 + $0x38] sm:$0xff]
        %v1319 = vadd.f32 %v1311, %v1312
        %v1320 = vadd.f32 %v1319, %v1313
        %v1321 = vadd.f32 %v1320, %v1314
        %1322 = vadd.xlane.f32.xlu0 %v1321
        %v1323 = vpop.xlane.xlu0 %1322
        %v1324 = vadd.f32 %v1315, %v1316
        %v1325 = vadd.f32 %v1324, %v1317
        %v1326 = vadd.f32 %v1325, %v1318
        %1327 = vadd.xlane.f32.xlu0 %v1326
        %v1328 = vpop.xlane.xlu0 %1327
        %v1329 = vrcp.pop 512.0
        %v1330 = vmul.f32 %v1323, %v1329
        %v1331 = vmul.f32 %v1328, %v1329
        %v1332 = vsub.f32 %v1311, %v1330
        %v1333 = vsub.f32 %v1312, %v1330
        %v1334 = vsub.f32 %v1313, %v1330
        %v1335 = vsub.f32 %v1314, %v1330
        %v1336 = vsub.f32 %v1315, %v1331
        %v1337 = vsub.f32 %v1316, %v1331
        %v1338 = vsub.f32 %v1317, %v1331
        %v1339 = vsub.f32 %v1318, %v1331
        %v1340 = vmul.f32 %v1332, %v1332
        %v1341 = vmul.f32 %v1333, %v1333
        %v1342 = vmul.f32 %v1334, %v1334
        %v1343 = vmul.f32 %v1335, %v1335
        %v1344 = vmul.f32 %v1336, %v1336
        %v1345 = vmul.f32 %v1337, %v1337
        %v1346 = vmul.f32 %v1338, %v1338
        %v1347 = vmul.f32 %v1339, %v1339
        %v1348 = vadd.f32 %v1340, %v1341
        %v1349 = vadd.f32 %v1348, %v1342
        %v1350 = vadd.f32 %v1349, %v1343
        %1351 = vadd.xlane.f32.xlu0 %v1350
        %v1352 = vpop.xlane.xlu0 %1351
        %v1353 = vadd.f32 %v1344, %v1345
        %v1354 = vadd.f32 %v1353, %v1346
        %v1355 = vadd.f32 %v1354, %v1347
        %1356 = vadd.xlane.f32.xlu0 %v1355
        %v1357 = vpop.xlane.xlu0 %1356
        %v1358 = vmul.f32 %v1352, %v1329
        %v1359 = vmul.f32 %v1357, %v1329
        %v1360 = vadd.f32 %v1358, 1e-05
        %v1361 = vadd.f32 %v1359, 1e-05
        %v1362 = vrsqrt.pop %v1360
        %v1363 = vrsqrt.pop %v1361
        %v1364 = vmul.f32 %v1332, %v1362
        %v1365 = vmul.f32 %v1333, %v1362
        %v1366 = vmul.f32 %v1334, %v1362
        %v1367 = vmul.f32 %v1335, %v1362
        %v1368 = vmul.f32 %v1336, %v1363
        %v1369 = vmul.f32 %v1337, %v1363
        %v1370 = vmul.f32 %v1338, %v1363
        %v1371 = vmul.f32 %v1339, %v1363
        %v1372 = vld [vmem:[%s3] sm:$0xf]
        %v1374 = vlaneseq
        %v1375 = vshrl.u32 %v1374, 7
        %v1376 = vsub.s32 0, %v1375
        %v1377 = vrot.slane %v1372, %v1376
        %v1378 = vlaneseq
        %v1379 = vshrl.u32 %v1378, 7
        %v1380 = vsub.s32 1, %v1379
        %v1381 = vrot.slane %v1372, %v1380
        %v1382 = vlaneseq
        %v1383 = vshrl.u32 %v1382, 7
        %v1384 = vsub.s32 2, %v1383
        %v1385 = vrot.slane %v1372, %v1384
        %v1386 = vlaneseq
        %v1387 = vshrl.u32 %v1386, 7
        %v1388 = vsub.s32 3, %v1387
        %v1389 = vrot.slane %v1372, %v1388
        %v1394 = vmul.f32 %v1364, %v1377
        %v1395 = vmul.f32 %v1365, %v1381
        %v1396 = vmul.f32 %v1366, %v1385
        %v1397 = vmul.f32 %v1367, %v1389
        %v1398 = vmul.f32 %v1368, %v1377
        %v1399 = vmul.f32 %v1369, %v1381
        %v1400 = vmul.f32 %v1370, %v1385
        %v1401 = vmul.f32 %v1371, %v1389
        %v1402 = vld [vmem:[%s4] sm:$0xf]
        %v1404 = vlaneseq
        %v1405 = vshrl.u32 %v1404, 7
        %v1406 = vsub.s32 0, %v1405
        %v1407 = vrot.slane %v1402, %v1406
        %v1408 = vlaneseq
        %v1409 = vshrl.u32 %v1408, 7
        %v1410 = vsub.s32 1, %v1409
        %v1411 = vrot.slane %v1402, %v1410
        %v1412 = vlaneseq
        %v1413 = vshrl.u32 %v1412, 7
        %v1414 = vsub.s32 2, %v1413
        %v1415 = vrot.slane %v1402, %v1414
        %v1416 = vlaneseq
        %v1417 = vshrl.u32 %v1416, 7
        %v1418 = vsub.s32 3, %v1417
        %v1419 = vrot.slane %v1402, %v1418
        %v1424 = vadd.f32 %v1394, %v1407
        %v1425 = vadd.f32 %v1395, %v1411
        %v1426 = vadd.f32 %v1396, %v1415
        %v1427 = vadd.f32 %v1397, %v1419
        %v1428 = vadd.f32 %v1398, %v1407
        %v1429 = vadd.f32 %v1399, %v1411
        %v1430 = vadd.f32 %v1400, %v1415
        %v1431 = vadd.f32 %v1401, %v1419
        %v1432 = vmax.f32 %v1424, 0.0
        %v1433 = vmax.f32 %v1425, 0.0
        %v1434 = vmax.f32 %v1426, 0.0
        %v1435 = vmax.f32 %v1427, 0.0
        %v1436 = vmax.f32 %v1428, 0.0
        %v1437 = vmax.f32 %v1429, 0.0
        %v1438 = vmax.f32 %v1430, 0.0
        %v1439 = vmax.f32 %v1431, 0.0
        %v1440 = vpack.c.bf16 %v1436, %v1432
        %v1441 = vpack.c.bf16 %v1437, %v1433
        %v1442 = vpack.c.bf16 %v1438, %v1434
        %v1443 = vpack.c.bf16 %v1439, %v1435
        %v1448 = vunpack.c.l.b16 %v1440
        %v1449 = vunpack.c.l.b16 %v1441
        %v1450 = vunpack.c.l.b16 %v1442
        %v1451 = vunpack.c.l.b16 %v1443
        %v1452 = vunpack.c.h.b16 %v1440
        %v1453 = vunpack.c.h.b16 %v1441
        %v1454 = vunpack.c.h.b16 %v1442
        %v1455 = vunpack.c.h.b16 %v1443
        %v1456 = vpack.c.b16 %v1449, %v1448
        %v1457 = vpack.c.b16 %v1451, %v1450
        %v1458 = vpack.c.b16 %v1453, %v1452
        %v1459 = vpack.c.b16 %v1455, %v1454
        %1464 = vst [vmem:[%s284] sm:$0xff] %v1456
        %1465 = vst [vmem:[%s284 + $0x8] sm:$0xff] %v1457
        %1466 = vst [vmem:[%s284 + $0x10] sm:$0xff] %v1458
        %1467 = vst [vmem:[%s284 + $0x18] sm:$0xff] %v1459
      $region48: #{feedforward_block.4} parent=39 // pred_fallthru
        _
      %s1468 = smul.u32 2, %s20
      %p1469 = scmp.lt.s32.totalorder %s1468, 3
      %s1470 = scalar_select %p1469, %s1468, 3
      %s1471 = smul.addr %s1470, 4
      %s1472 = smul.addr %s1471, 4
      %s1473 = scalar_lea.vmem %s5, %s1472
      // Predicated region
      $region49: #{feedforward_block.4} parent=39 // pred_check
        %p1474 = pneg %p163
      $region50: #{feedforward_block.4} parent=39 // pred_check_branch
        %1476 = sbr.rel (%p1474) target = $region52
      $region51: #{feedforward_block.4} parent=39 // pred_region
        %s1477 = smul.u32 2, %s20
      $region52: #{feedforward_block.4} parent=39 // pred_fallthru
        _
    $region40: #{feedforward_block.4} parent=5 // pred_fallthru
      _
    %p1478 = scmp.le.s32.totalorder 2, %s11
    // Predicated region
    $region53: #{feedforward_block.4} parent=5 // pred_check
      %p1479 = pneg %p1478
    $region54: #{feedforward_block.4} parent=5 // pred_check_branch
      %1481 = sbr.rel (%p1479) target = $region56
    $region55: #{feedforward_block.4} parent=5 // pred_region
      %s1482 = ssub.s32 %s11, 2
      // Predicated region
      $region57: #{feedforward_block.4} parent=55 // pred_check
        %p1483 = pneg %p169
      $region58: #{feedforward_block.4} parent=55 // pred_check_branch
        %1485 = sbr.rel (%p1483) target = $region60
      $region59: #{feedforward_block.4} parent=55 // pred_region
        %s1486 = smul.u32 2, %s22
        %p1487 = scmp.lt.s32.totalorder %s1486, 3
        %s1488 = scalar_select %p1487, %s1486, 3
        %s1489 = smul.addr %s1488, 4
        %s1490 = smul.addr %s1489, 4
        %s1491 = scalar_lea.vmem %s5, %s1490
      $region60: #{feedforward_block.4} parent=55 // pred_fallthru
        _
    $region56: #{feedforward_block.4} parent=5 // pred_fallthru
      _
  $region6: #{feedforward_block.4} parent=0 // loop_footer
    %s15 = sadd.s32 1, %s11
  $region7: #{feedforward_block.4} parent=0 // loop_footer_branch
    %10 = sbr.rel target = $region3
  $region8: #{feedforward_block.4} parent=0 // loop_exit
    _

</llo_original>
